<compile_context>
chip_gen: v7x
topology: tpu7x:2x2x1
jax: 0.10.0
libtpu: 0.0.40
codegen_flags: <defaults>
</compile_context>

<pallas_src>
import functools

import jax
import jax.numpy as jnp
from jax import lax
from jax.experimental import pallas as pl
from jax.experimental.pallas import tpu as pltpu


def _decoder_kernel(x_ref,            # (T, H)   bf16  relu(emb[tokens])  (resident)
                    h0_ref,           # (1, H)   f32   initial hidden     (resident)
                    w_ih_ref,         # (H, 3H)  bf16                      (resident)
                    b_ih_ref,         # (1, 3H)  f32                       (resident)
                    w_hh_ref,         # (H, 3H)  bf16                      (resident)
                    b_hh_ref,         # (1, 3H)  f32                       (resident)
                    w_out_ref,        # (H, TO)  bf16  vocab tile j
                    b_out_ref,        # (1, TO)  f32   vocab tile j
                    logits_ref,       # out (T, TO) f32  vocab tile j
                    lse_ref,          # out (T, 1)  f32  (resident, written last tile)
                    h_out_ref,        # out (1, H)  f32  (resident, written first tile)
                    gi_ref,           # scratch (T, 3H) f32  batched input projection
                    h_all_ref,        # scratch (T, H)  f32  all hidden states
                    m_ref,            # scratch (T, 1)  f32  running max
                    l_ref,            # scratch (T, 1)  f32  running sum(exp)
                    *, seq_len, hidden_size):
    T, H = seq_len, hidden_size
    j = pl.program_id(0)

    # ---- Grid step 0: prologue + serial GRU recurrence -----------------------
    @pl.when(j == 0)
    def _prologue_and_recurrence():
        # Batched non-recurrent input projection for ALL T steps (M=T matmul).
        gi_ref[...] = (jnp.dot(x_ref[...], w_ih_ref[...],
                               preferred_element_type=jnp.float32)
                       + b_ih_ref[...])

        w_hh = w_hh_ref[...]
        b_hh = b_hh_ref[...]

        def step(t, h):
            gi = gi_ref[pl.ds(t, 1), :]                                # (1, 3H) f32
            gh = (jnp.dot(h.astype(jnp.bfloat16), w_hh,
                          preferred_element_type=jnp.float32) + b_hh)  # (1, 3H) f32
            # PyTorch GRU gate order: r, z, n.  Gate math stays f32 (v5e-safe).
            r = jax.nn.sigmoid(gi[:, 0:H] + gh[:, 0:H])
            z = jax.nn.sigmoid(gi[:, H:2 * H] + gh[:, H:2 * H])
            n = jnp.tanh(gi[:, 2 * H:3 * H] + r * gh[:, 2 * H:3 * H])
            h_new = (1.0 - z) * n + z * h                              # (1, H) f32
            h_all_ref[pl.ds(t, 1), :] = h_new
            return h_new

        if T <= 32:
            # Short fixed trip count: fully unroll at trace time (scheduler
            # visibility, no loop overhead).
            h = h0_ref[...]
            for t in range(T):
                h = step(t, h)
            h_final = h
        else:
            h_final = lax.fori_loop(0, T, step, h0_ref[...])

        h_out_ref[...] = h_final
        m_ref[...] = jnp.full_like(m_ref, -jnp.inf)
        l_ref[...] = jnp.zeros_like(l_ref)

    # ---- Every grid step: batched output projection for vocab tile j --------
    logits = (jnp.dot(h_all_ref[...].astype(jnp.bfloat16), w_out_ref[...],
                      preferred_element_type=jnp.float32)
              + b_out_ref[...])                                        # (T, TO) f32
    logits_ref[...] = logits

    # Online logsumexp across vocab tiles (f32).
    m_prev = m_ref[...]
    m_new = jnp.maximum(m_prev, jnp.max(logits, axis=-1, keepdims=True))
    l_ref[...] = (l_ref[...] * jnp.exp(m_prev - m_new)
                  + jnp.sum(jnp.exp(logits - m_new), axis=-1, keepdims=True))
    m_ref[...] = m_new

    @pl.when(j == pl.num_programs(0) - 1)
    def _finalize():
        lse_ref[...] = m_ref[...] + jnp.log(l_ref[...])


def _pick_vocab_tile(output_size):
    for cand in (512, 256, 128):
        if output_size % cand == 0:
            return cand
    return output_size


def decoder_rnn_fused(params, tokens, hidden, *, vocab_tile=None):
    """Fused multi-step decode.

    Args:
      params: dict (see init_params).
      tokens: int32 token ids, shape (T,).
      hidden: f32 GRU hidden state, shape (1, 1, H).

    Returns:
      (log_probs (T, O) f32, new_hidden (1, 1, H) f32)
    """
    H = params["w_hh_t"].shape[0]
    O = params["w_out_t"].shape[1]
    T = int(tokens.shape[0])

    tokens = tokens.reshape(T).astype(jnp.int32)
    # Embedding gather + ReLU hoisted out of the kernel (one XLA gather).
    x = jnp.maximum(jnp.take(params["embedding"], tokens, axis=0),
                    0).astype(jnp.bfloat16)                 # (T, H) bf16
    h0 = hidden.reshape(1, H).astype(jnp.float32)

    if vocab_tile is None:
        vocab_tile = _pick_vocab_tile(O)
    assert O % vocab_tile == 0
    n_tiles = O // vocab_tile

    kernel = functools.partial(_decoder_kernel, seq_len=T, hidden_size=H)

    # Constant index_map -> block DMA'd once, resident across all vocab tiles.
    def resident(shape):
        return pl.BlockSpec(shape, lambda j: (0,) * len(shape))

    grid_spec = pltpu.PrefetchScalarGridSpec(
        num_scalar_prefetch=0,
        grid=(n_tiles,),
        in_specs=[
            resident((T, H)),                                   # x (relu'd emb)
            resident((1, H)),                                   # h0
            resident((H, 3 * H)),                               # W_ih^T  bf16
            resident((1, 3 * H)),                               # b_ih    f32
            resident((H, 3 * H)),                               # W_hh^T  bf16
            resident((1, 3 * H)),                               # b_hh    f32
            pl.BlockSpec((H, vocab_tile), lambda j: (0, j)),    # W_out^T tile
            pl.BlockSpec((1, vocab_tile), lambda j: (0, j)),    # b_out   tile
        ],
        out_specs=(
            pl.BlockSpec((T, vocab_tile), lambda j: (0, j)),    # logits tile
            resident((T, 1)),                                   # lse
            resident((1, H)),                                   # h_final
        ),
        scratch_shapes=[
            pltpu.VMEM((T, 3 * H), jnp.float32),                # GI prologue
            pltpu.VMEM((T, H), jnp.float32),                    # all hidden states
            pltpu.VMEM((T, 1), jnp.float32),                    # running max
            pltpu.VMEM((T, 1), jnp.float32),                    # running sum
        ],
    )

    logits, lse, h_out = pl.pallas_call(
        kernel,
        grid_spec=grid_spec,
        out_shape=(
            jax.ShapeDtypeStruct((T, O), jnp.float32),
            jax.ShapeDtypeStruct((T, 1), jnp.float32),
            jax.ShapeDtypeStruct((1, H), jnp.float32),
        ),
        compiler_params=pltpu.CompilerParams(
            # Scratch (h_all, m, l) carries across vocab tiles -> arbitrary.
            dimension_semantics=("arbitrary",),
            vmem_limit_bytes=32 * 1024 * 1024,
        ),
    )(x, h0,
      params["w_ih_t"], params["b_ih"],
      params["w_hh_t"], params["b_hh"],
      params["w_out_t"], params["b_out"])

    # log_softmax = logits - logsumexp(logits); one cheap XLA broadcast-subtract.
    logp = logits - lse
    return logp, h_out.reshape(1, 1, H)


def decoder_rnn_forward(params, input1, hidden):
    """JAX/Pallas equivalent of DecoderRNN.forward (single step, T = 1)."""
    tok = jnp.reshape(input1, (1,)).astype(jnp.int32)
    logp, h_new = decoder_rnn_fused(params, tok, hidden)
    return logp, h_new       # (1, O), (1, 1, H)


def init_params(key, hidden_size, output_size):
    """Synthetic parameters matching nn.Embedding / nn.GRU / nn.Linear shapes.

    Weight streams are stored in bf16 (HBM bandwidth / MXU operands); biases
    stay f32.  Weight matrices are pre-transposed to (in_features, out_features).
    """
    ks = jax.random.split(key, 7)
    scale = 0.1
    emb = scale * jax.random.normal(ks[0], (output_size, hidden_size), jnp.float32)
    w_ih = scale * jax.random.normal(ks[1], (3 * hidden_size, hidden_size), jnp.float32)
    w_hh = scale * jax.random.normal(ks[2], (3 * hidden_size, hidden_size), jnp.float32)
    b_ih = scale * jax.random.normal(ks[3], (3 * hidden_size,), jnp.float32)
    b_hh = scale * jax.random.normal(ks[4], (3 * hidden_size,), jnp.float32)
    w_out = scale * jax.random.normal(ks[5], (output_size, hidden_size), jnp.float32)
    b_out = scale * jax.random.normal(ks[6], (output_size,), jnp.float32)
    return {
        "embedding": emb.astype(jnp.bfloat16),           # (O, H)
        "w_ih_t": w_ih.T.astype(jnp.bfloat16),           # (H, 3H)
        "w_hh_t": w_hh.T.astype(jnp.bfloat16),           # (H, 3H)
        "b_ih": b_ih.reshape(1, 3 * hidden_size),
        "b_hh": b_hh.reshape(1, 3 * hidden_size),
        "w_out_t": w_out.T.astype(jnp.bfloat16),         # (H, O)
        "b_out": b_out.reshape(1, output_size),
    }


def init_hidden(hidden_size):
    return jnp.zeros((1, 1, hidden_size), jnp.float32)


def _reference_forward(params, tokens, hidden):
    """Pure-JAX f32 reference (same bf16 weights upcast) for validation."""
    H = params["w_hh_t"].shape[0]
    emb = params["embedding"].astype(jnp.float32)
    w_ih = params["w_ih_t"].astype(jnp.float32)
    w_hh = params["w_hh_t"].astype(jnp.float32)
    w_out = params["w_out_t"].astype(jnp.float32)
    b_ih, b_hh, b_out = params["b_ih"], params["b_hh"], params["b_out"]
    h = hidden.reshape(1, H)
    outs = []
    for t in range(tokens.shape[0]):
        x = jnp.maximum(emb[tokens[t]][None, :], 0.0)
        gi = x @ w_ih + b_ih
        gh = h @ w_hh + b_hh
        r = jax.nn.sigmoid(gi[:, :H] + gh[:, :H])
        z = jax.nn.sigmoid(gi[:, H:2 * H] + gh[:, H:2 * H])
        n = jnp.tanh(gi[:, 2 * H:] + r * gh[:, 2 * H:])
        h = (1.0 - z) * n + z * h
        logits = h @ w_out + b_out
        outs.append(jax.nn.log_softmax(logits, axis=-1))
    return jnp.concatenate(outs, axis=0), h.reshape(1, 1, H)


if __name__ == "__main__":
    hidden_size = 256     # matches the PyTorch spec, lane-aligned
    output_size = 256     # small "vocab", lane-aligned
    T = 8                 # fused decode steps

    key = jax.random.PRNGKey(0)
    pkey, tkey = jax.random.split(key)
    params = init_params(pkey, hidden_size, output_size)
    hidden = init_hidden(hidden_size)

    # --- Single-step forward (matches PyTorch DecoderRNN.forward signature) ---
    input1 = jax.random.randint(tkey, (1, 1), 0, output_size, dtype=jnp.int32)
    log_probs, new_hidden = decoder_rnn_forward(params, input1, hidden)
    jax.block_until_ready((log_probs, new_hidden))

    assert log_probs.shape == (1, output_size)
    assert new_hidden.shape == (1, 1, hidden_size)
    assert abs(float(jnp.sum(jnp.exp(log_probs))) - 1.0) < 1e-3

    # --- Fused multi-step decode; vocab_tile=128 exercises the tiled
    #     online-logsumexp epilogue (2 vocab tiles). ---
    tokens = jax.random.randint(jax.random.fold_in(tkey, 1), (T,), 0,
                                output_size, dtype=jnp.int32)
    logp_seq, h_final = decoder_rnn_fused(params, tokens, hidden, vocab_tile=128)
    jax.block_until_ready((logp_seq, h_final))

    assert logp_seq.shape == (T, output_size)
    assert h_final.shape == (1, 1, hidden_size)
    prob_sums = jnp.sum(jnp.exp(logp_seq), axis=-1)
    assert bool(jnp.all(jnp.abs(prob_sums - 1.0) < 1e-3))

    # Validate against a pure-JAX reference (bf16 activation casts -> loose tol).
    ref_logp, ref_h = _reference_forward(params, tokens, hidden)
    assert float(jnp.max(jnp.abs(logp_seq - ref_logp))) < 2e-2
    assert float(jnp.max(jnp.abs(h_final - ref_h))) < 2e-2

    # Single-step result must also match the reference's first ... (own token).
    ref_logp1, ref_h1 = _reference_forward(params, input1.reshape(1), hidden)
    assert float(jnp.max(jnp.abs(log_probs - ref_logp1))) < 2e-2
    assert float(jnp.max(jnp.abs(new_hidden - ref_h1))) < 2e-2

    print("KERNEL_OK")
</pallas_src>

<mosaic_0001>
module attributes {stable_mosaic.version = 11 : i64} {
  func.func @_decoder_kernel(%arg0: i32, %arg1: memref<1x256xbf16, #tpu.memory_space<vmem>>, %arg2: memref<1x256xf32, #tpu.memory_space<vmem>>, %arg3: memref<256x768xbf16, #tpu.memory_space<vmem>>, %arg4: memref<1x768xf32, #tpu.memory_space<vmem>>, %arg5: memref<256x768xbf16, #tpu.memory_space<vmem>>, %arg6: memref<1x768xf32, #tpu.memory_space<vmem>>, %arg7: memref<256x256xbf16, #tpu.memory_space<vmem>>, %arg8: memref<1x256xf32, #tpu.memory_space<vmem>>, %arg9: memref<1x256xf32, #tpu.memory_space<vmem>>, %arg10: memref<1x1xf32, #tpu.memory_space<vmem>>, %arg11: memref<1x256xf32, #tpu.memory_space<vmem>>, %arg12: memref<1x768xf32, #tpu.memory_space<vmem>>, %arg13: memref<1x256xf32, #tpu.memory_space<vmem>>, %arg14: memref<1x1xf32, #tpu.memory_space<vmem>>, %arg15: memref<1x1xf32, #tpu.memory_space<vmem>>) attributes {dimension_semantics = [#tpu.dimension_semantics<arbitrary>], iteration_bounds = array<i64: 1>, scalar_prefetch = 0 : i64, scratch_operands = 4 : i64, tpu.core_type = #tpu.core_type<tc>, window_params = [{pipeline_mode = #tpu.pipeline_mode<synchronous>, transform_indices = @transform_0, window_bounds = array<i64: 1, 256>}, {pipeline_mode = #tpu.pipeline_mode<synchronous>, transform_indices = @transform_1, window_bounds = array<i64: 1, 256>}, {pipeline_mode = #tpu.pipeline_mode<synchronous>, transform_indices = @transform_2, window_bounds = array<i64: 256, 768>}, {pipeline_mode = #tpu.pipeline_mode<synchronous>, transform_indices = @transform_3, window_bounds = array<i64: 1, 768>}, {pipeline_mode = #tpu.pipeline_mode<synchronous>, transform_indices = @transform_4, window_bounds = array<i64: 256, 768>}, {pipeline_mode = #tpu.pipeline_mode<synchronous>, transform_indices = @transform_5, window_bounds = array<i64: 1, 768>}, {transform_indices = @transform_6, window_bounds = array<i64: 256, 256>}, {transform_indices = @transform_7, window_bounds = array<i64: 1, 256>}, {transform_indices = @transform_8, window_bounds = array<i64: 1, 256>}, {pipeline_mode = #tpu.pipeline_mode<synchronous>, transform_indices = @transform_9, window_bounds = array<i64: 1, 1>}, {pipeline_mode = #tpu.pipeline_mode<synchronous>, transform_indices = @transform_10, window_bounds = array<i64: 1, 256>}]} {
    %c0_i32 = arith.constant 0 : i32
    %0 = arith.cmpi eq, %arg0, %c0_i32 : i32
    %1 = arith.extui %0 : i1 to i32
    %c0_i32_0 = arith.constant 0 : i32
    %2 = arith.cmpi ne, %1, %c0_i32_0 : i32
    scf.if %2 {
      %c0_20 = arith.constant 0 : index
      %c0_21 = arith.constant 0 : index
      %29 = vector.load %arg1[%c0_20, %c0_21] : memref<1x256xbf16, #tpu.memory_space<vmem>>, vector<1x256xbf16>
      %c0_22 = arith.constant 0 : index
      %c0_23 = arith.constant 0 : index
      %30 = vector.load %arg3[%c0_22, %c0_23] : memref<256x768xbf16, #tpu.memory_space<vmem>>, vector<256x768xbf16>
      %cst_24 = arith.constant dense<0.000000e+00> : vector<1x768xf32>
      %31 = tpu.matmul %29, %30, %cst_24 {dimension_numbers = #tpu.dot_dimension_numbers<[1], [0], [0], [1], [0, 0, 1, 1], [], []>} : vector<1x256xbf16>, vector<256x768xbf16>, vector<1x768xf32> -> vector<1x768xf32>
      %c0_25 = arith.constant 0 : index
      %c0_26 = arith.constant 0 : index
      %32 = vector.load %arg4[%c0_25, %c0_26] : memref<1x768xf32, #tpu.memory_space<vmem>>, vector<1x768xf32>
      %33 = arith.addf %31, %32 : vector<1x768xf32>
      %c0_27 = arith.constant 0 : index
      %c0_28 = arith.constant 0 : index
      %34 = vector.load %arg12[%c0_27, %c0_28] : memref<1x768xf32, #tpu.memory_space<vmem>>, vector<1x768xf32>
      tpu.vector_store %arg12[%c0_27, %c0_28], %33 {strides = array<i32>} : memref<1x768xf32, #tpu.memory_space<vmem>>, vector<1x768xf32>,
      %c0_29 = arith.constant 0 : index
      %c0_30 = arith.constant 0 : index
      %35 = vector.load %arg5[%c0_29, %c0_30] : memref<256x768xbf16, #tpu.memory_space<vmem>>, vector<256x768xbf16>
      %c0_31 = arith.constant 0 : index
      %c0_32 = arith.constant 0 : index
      %36 = vector.load %arg6[%c0_31, %c0_32] : memref<1x768xf32, #tpu.memory_space<vmem>>, vector<1x768xf32>
      %c0_33 = arith.constant 0 : index
      %c0_34 = arith.constant 0 : index
      %37 = vector.load %arg2[%c0_33, %c0_34] : memref<1x256xf32, #tpu.memory_space<vmem>>, vector<1x256xf32>
      %c0_35 = arith.constant 0 : index
      %c0_36 = arith.constant 0 : index
      %38 = vector.load %arg12[%c0_35, %c0_36] : memref<1x768xf32, #tpu.memory_space<vmem>>, vector<1x768xf32>
      %39 = arith.truncf %37 : vector<1x256xf32> to vector<1x256xbf16>
      %cst_37 = arith.constant dense<0.000000e+00> : vector<1x768xf32>
      %40 = tpu.matmul %39, %35, %cst_37 {dimension_numbers = #tpu.dot_dimension_numbers<[1], [0], [0], [1], [0, 0, 1, 1], [], []>} : vector<1x256xbf16>, vector<256x768xbf16>, vector<1x768xf32> -> vector<1x768xf32>
      %41 = arith.addf %40, %36 : vector<1x768xf32>
      %42 = vector.extract_strided_slice %38 {offsets = [0, 0], sizes = [1, 256], strides = [1, 1]} : vector<1x768xf32> to vector<1x256xf32>
      %43 = vector.extract_strided_slice %41 {offsets = [0, 0], sizes = [1, 256], strides = [1, 1]} : vector<1x768xf32> to vector<1x256xf32>
      %44 = arith.addf %42, %43 : vector<1x256xf32>
      %45 = arith.negf %44 : vector<1x256xf32>
      %46 = math.exp %45 : vector<1x256xf32>
      %cst_38 = arith.constant 1.000000e+00 : f32
      %47 = vector.broadcast %cst_38 : f32 to vector<1x256xf32>
      %48 = arith.addf %47, %46 : vector<1x256xf32>
      %49 = arith.divf %47, %48 : vector<1x256xf32>
      %50 = vector.extract_strided_slice %38 {offsets = [0, 256], sizes = [1, 256], strides = [1, 1]} : vector<1x768xf32> to vector<1x256xf32>
      %51 = vector.extract_strided_slice %41 {offsets = [0, 256], sizes = [1, 256], strides = [1, 1]} : vector<1x768xf32> to vector<1x256xf32>
      %52 = arith.addf %50, %51 : vector<1x256xf32>
      %53 = arith.negf %52 : vector<1x256xf32>
      %54 = math.exp %53 : vector<1x256xf32>
      %cst_39 = arith.constant 1.000000e+00 : f32
      %55 = vector.broadcast %cst_39 : f32 to vector<1x256xf32>
      %56 = arith.addf %55, %54 : vector<1x256xf32>
      %57 = arith.divf %55, %56 : vector<1x256xf32>
      %58 = vector.extract_strided_slice %38 {offsets = [0, 512], sizes = [1, 256], strides = [1, 1]} : vector<1x768xf32> to vector<1x256xf32>
      %59 = vector.extract_strided_slice %41 {offsets = [0, 512], sizes = [1, 256], strides = [1, 1]} : vector<1x768xf32> to vector<1x256xf32>
      %60 = arith.mulf %49, %59 : vector<1x256xf32>
      %61 = arith.addf %58, %60 : vector<1x256xf32>
      %62 = math.tanh %61 : vector<1x256xf32>
      %cst_40 = arith.constant 1.000000e+00 : f32
      %63 = vector.broadcast %cst_40 : f32 to vector<1x256xf32>
      %64 = arith.subf %63, %57 : vector<1x256xf32>
      %65 = arith.mulf %64, %62 : vector<1x256xf32>
      %66 = arith.mulf %57, %37 : vector<1x256xf32>
      %67 = arith.addf %65, %66 : vector<1x256xf32>
      %c0_41 = arith.constant 0 : index
      %c0_42 = arith.constant 0 : index
      %68 = vector.load %arg13[%c0_41, %c0_42] : memref<1x256xf32, #tpu.memory_space<vmem>>, vector<1x256xf32>
      tpu.vector_store %arg13[%c0_41, %c0_42], %67 {strides = array<i32>} : memref<1x256xf32, #tpu.memory_space<vmem>>, vector<1x256xf32>,
      %c0_43 = arith.constant 0 : index
      %c0_44 = arith.constant 0 : index
      %69 = vector.load %arg11[%c0_43, %c0_44] : memref<1x256xf32, #tpu.memory_space<vmem>>, vector<1x256xf32>
      tpu.vector_store %arg11[%c0_43, %c0_44], %67 {strides = array<i32>} : memref<1x256xf32, #tpu.memory_space<vmem>>, vector<1x256xf32>,
      %cst_45 = arith.constant 0xFF800000 : f32
      %70 = vector.broadcast %cst_45 : f32 to vector<1x1xf32>
      %c0_46 = arith.constant 0 : index
      %c0_47 = arith.constant 0 : index
      %71 = vector.load %arg14[%c0_46, %c0_47] : memref<1x1xf32, #tpu.memory_space<vmem>>, vector<1x1xf32>
      tpu.vector_store %arg14[%c0_46, %c0_47], %70 {strides = array<i32>} : memref<1x1xf32, #tpu.memory_space<vmem>>, vector<1x1xf32>,
      %cst_48 = arith.constant 0.000000e+00 : f32
      %72 = vector.broadcast %cst_48 : f32 to vector<1x1xf32>
      %c0_49 = arith.constant 0 : index
      %c0_50 = arith.constant 0 : index
      %73 = vector.load %arg15[%c0_49, %c0_50] : memref<1x1xf32, #tpu.memory_space<vmem>>, vector<1x1xf32>
      tpu.vector_store %arg15[%c0_49, %c0_50], %72 {strides = array<i32>} : memref<1x1xf32, #tpu.memory_space<vmem>>, vector<1x1xf32>,
    } else {
    }
    %c0 = arith.constant 0 : index
    %c0_1 = arith.constant 0 : index
    %3 = vector.load %arg13[%c0, %c0_1] : memref<1x256xf32, #tpu.memory_space<vmem>>, vector<1x256xf32>
    %4 = arith.truncf %3 : vector<1x256xf32> to vector<1x256xbf16>
    %c0_2 = arith.constant 0 : index
    %c0_3 = arith.constant 0 : index
    %5 = vector.load %arg7[%c0_2, %c0_3] : memref<256x256xbf16, #tpu.memory_space<vmem>>, vector<256x256xbf16>
    %cst = arith.constant dense<0.000000e+00> : vector<1x256xf32>
    %6 = tpu.matmul %4, %5, %cst {dimension_numbers = #tpu.dot_dimension_numbers<[1], [0], [0], [1], [0, 0, 1, 1], [], []>} : vector<1x256xbf16>, vector<256x256xbf16>, vector<1x256xf32> -> vector<1x256xf32>
    %c0_4 = arith.constant 0 : index
    %c0_5 = arith.constant 0 : index
    %7 = vector.load %arg8[%c0_4, %c0_5] : memref<1x256xf32, #tpu.memory_space<vmem>>, vector<1x256xf32>
    %8 = arith.addf %6, %7 : vector<1x256xf32>
    %c0_6 = arith.constant 0 : index
    %c0_7 = arith.constant 0 : index
    %9 = vector.load %arg9[%c0_6, %c0_7] : memref<1x256xf32, #tpu.memory_space<vmem>>, vector<1x256xf32>
    tpu.vector_store %arg9[%c0_6, %c0_7], %8 {strides = array<i32>} : memref<1x256xf32, #tpu.memory_space<vmem>>, vector<1x256xf32>,
    %c0_8 = arith.constant 0 : index
    %c0_9 = arith.constant 0 : index
    %10 = vector.load %arg14[%c0_8, %c0_9] : memref<1x1xf32, #tpu.memory_space<vmem>>, vector<1x1xf32>
    %cst_10 = arith.constant dense<0xFF800000> : vector<1xf32>
    %11 = vector.multi_reduction <maximumf>, %8, %cst_10 [1] : vector<1x256xf32> to vector<1xf32>
    %12 = vector.shape_cast %11 : vector<1xf32> to vector<1x1xf32>
    %13 = arith.maximumf %10, %12 : vector<1x1xf32>
    %c0_11 = arith.constant 0 : index
    %c0_12 = arith.constant 0 : index
    %14 = vector.load %arg15[%c0_11, %c0_12] : memref<1x1xf32, #tpu.memory_space<vmem>>, vector<1x1xf32>
    %15 = arith.subf %10, %13 : vector<1x1xf32>
    %16 = math.exp %15 : vector<1x1xf32>
    %17 = arith.mulf %14, %16 : vector<1x1xf32>
    %18 = vector.broadcast %13 : vector<1x1xf32> to vector<1x256xf32>
    %19 = arith.subf %8, %18 : vector<1x256xf32>
    %20 = math.exp %19 : vector<1x256xf32>
    %cst_13 = arith.constant dense<0.000000e+00> : vector<1xf32>
    %21 = vector.multi_reduction <add>, %20, %cst_13 [1] : vector<1x256xf32> to vector<1xf32>
    %22 = vector.shape_cast %21 : vector<1xf32> to vector<1x1xf32>
    %23 = arith.addf %17, %22 : vector<1x1xf32>
    %c0_14 = arith.constant 0 : index
    %c0_15 = arith.constant 0 : index
    %24 = vector.load %arg15[%c0_14, %c0_15] : memref<1x1xf32, #tpu.memory_space<vmem>>, vector<1x1xf32>
    tpu.vector_store %arg15[%c0_14, %c0_15], %23 {strides = array<i32>} : memref<1x1xf32, #tpu.memory_space<vmem>>, vector<1x1xf32>,
    %c0_16 = arith.constant 0 : index
    %c0_17 = arith.constant 0 : index
    %25 = vector.load %arg14[%c0_16, %c0_17] : memref<1x1xf32, #tpu.memory_space<vmem>>, vector<1x1xf32>
    tpu.vector_store %arg14[%c0_16, %c0_17], %13 {strides = array<i32>} : memref<1x1xf32, #tpu.memory_space<vmem>>, vector<1x1xf32>,
    %c0_i32_18 = arith.constant 0 : i32
    %26 = arith.cmpi eq, %arg0, %c0_i32_18 : i32
    %27 = arith.extui %26 : i1 to i32
    %c0_i32_19 = arith.constant 0 : i32
    %28 = arith.cmpi ne, %27, %c0_i32_19 : i32
    scf.if %28 {
      %c0_20 = arith.constant 0 : index
      %c0_21 = arith.constant 0 : index
      %29 = vector.load %arg14[%c0_20, %c0_21] : memref<1x1xf32, #tpu.memory_space<vmem>>, vector<1x1xf32>
      %c0_22 = arith.constant 0 : index
      %c0_23 = arith.constant 0 : index
      %30 = vector.load %arg15[%c0_22, %c0_23] : memref<1x1xf32, #tpu.memory_space<vmem>>, vector<1x1xf32>
      %31 = math.log %30 : vector<1x1xf32>
      %32 = arith.addf %29, %31 : vector<1x1xf32>
      %c0_24 = arith.constant 0 : index
      %c0_25 = arith.constant 0 : index
      %33 = vector.load %arg10[%c0_24, %c0_25] : memref<1x1xf32, #tpu.memory_space<vmem>>, vector<1x1xf32>
      tpu.vector_store %arg10[%c0_24, %c0_25], %32 {strides = array<i32>} : memref<1x1xf32, #tpu.memory_space<vmem>>, vector<1x1xf32>,
    } else {
    }
    return
  }
  func.func @transform_0(%arg0: i32) -> (i32, i32) {
    %c0_i32 = arith.constant 0 : i32
    %c0_i32_0 = arith.constant 0 : i32
    %c0_i32_1 = arith.constant 0 : i32
    return %c0_i32, %c0_i32_0 : i32, i32
  }
  func.func @transform_1(%arg0: i32) -> (i32, i32) {
    %c0_i32 = arith.constant 0 : i32
    %c0_i32_0 = arith.constant 0 : i32
    %c0_i32_1 = arith.constant 0 : i32
    return %c0_i32, %c0_i32_0 : i32, i32
  }
  func.func @transform_2(%arg0: i32) -> (i32, i32) {
    %c0_i32 = arith.constant 0 : i32
    %c0_i32_0 = arith.constant 0 : i32
    %c0_i32_1 = arith.constant 0 : i32
    return %c0_i32, %c0_i32_0 : i32, i32
  }
  func.func @transform_3(%arg0: i32) -> (i32, i32) {
    %c0_i32 = arith.constant 0 : i32
    %c0_i32_0 = arith.constant 0 : i32
    %c0_i32_1 = arith.constant 0 : i32
    return %c0_i32, %c0_i32_0 : i32, i32
  }
  func.func @transform_4(%arg0: i32) -> (i32, i32) {
    %c0_i32 = arith.constant 0 : i32
    %c0_i32_0 = arith.constant 0 : i32
    %c0_i32_1 = arith.constant 0 : i32
    return %c0_i32, %c0_i32_0 : i32, i32
  }
  func.func @transform_5(%arg0: i32) -> (i32, i32) {
    %c0_i32 = arith.constant 0 : i32
    %c0_i32_0 = arith.constant 0 : i32
    %c0_i32_1 = arith.constant 0 : i32
    return %c0_i32, %c0_i32_0 : i32, i32
  }
  func.func @transform_6(%arg0: i32) -> (i32, i32) {
    %c0_i32 = arith.constant 0 : i32
    %c0_i32_0 = arith.constant 0 : i32
    return %c0_i32, %arg0 : i32, i32
  }
  func.func @transform_7(%arg0: i32) -> (i32, i32) {
    %c0_i32 = arith.constant 0 : i32
    %c0_i32_0 = arith.constant 0 : i32
    return %c0_i32, %arg0 : i32, i32
  }
  func.func @transform_8(%arg0: i32) -> (i32, i32) {
    %c0_i32 = arith.constant 0 : i32
    %c0_i32_0 = arith.constant 0 : i32
    return %c0_i32, %arg0 : i32, i32
  }
  func.func @transform_9(%arg0: i32) -> (i32, i32) {
    %c0_i32 = arith.constant 0 : i32
    %c0_i32_0 = arith.constant 0 : i32
    %c0_i32_1 = arith.constant 0 : i32
    return %c0_i32, %c0_i32_0 : i32, i32
  }
  func.func @transform_10(%arg0: i32) -> (i32, i32) {
    %c0_i32 = arith.constant 0 : i32
    %c0_i32_0 = arith.constant 0 : i32
    %c0_i32_1 = arith.constant 0 : i32
    return %c0_i32, %c0_i32_0 : i32, i32
  }
}

</mosaic_0001>

<llo_original>
// kernel: tpu_custom_call.1
$region0: #{tpu_custom_call.1}
  #allocation0 [shape = 'u32[]', space=smem, size = 0x4, offset = 0x4, fixed_abs, tag = 'smem constant byte address 0x4 - core index']
  #allocation1 [shape = 'u32[144,128]{1,0:T(1,128)}', space=vmem, size = 0x12000, scoped, tag = 'internal scratch']
  #allocation2 [shape = 'f32[1,768]{1,0:T(1,128)}', space=vmem, size = 0xc00, scoped, tag = 'scratch operand']
  #allocation3 [shape = 'f32[1,256]{1,0:T(1,128)}', space=vmem, size = 0x400, scoped, tag = 'scratch operand']
  #allocation4 [shape = 'f32[1,1]{1,0:T(1,128)}', space=vmem, size = 0x200, scoped, tag = 'scratch operand']
  #allocation5 [shape = 'f32[1,1]{1,0:T(1,128)}', space=vmem, size = 0x200, scoped, tag = 'scratch operand']
  %s0 = inlined_call_operand.hbm [shape: bf16[1,256], index: 0, kind: input, shape index: {}]
  %s1 = inlined_call_operand.vmem [shape: f32[1,256], index: 1, kind: input, shape index: {}]
  %s2 = inlined_call_operand.hbm [shape: bf16[256,768], index: 2, kind: input, shape index: {}]
  %s3 = inlined_call_operand.vmem [shape: f32[1,768], index: 3, kind: input, shape index: {}]
  %s4 = inlined_call_operand.hbm [shape: bf16[256,768], index: 4, kind: input, shape index: {}]
  %s5 = inlined_call_operand.vmem [shape: f32[1,768], index: 5, kind: input, shape index: {}]
  %s6 = inlined_call_operand.hbm [shape: bf16[256,256], index: 6, kind: input, shape index: {}]
  %s7 = inlined_call_operand.vmem [shape: f32[1,256], index: 7, kind: input, shape index: {}]
  %s8 = inlined_call_operand.hbm [shape: f32[1,256], index: 8, kind: output, shape index: {0}]
  %s9 = inlined_call_operand.hbm [shape: f32[1,1], index: 9, kind: output, shape index: {1}]
  %s10 = inlined_call_operand.hbm [shape: f32[1,256], index: 10, kind: output, shape index: {2}]
  %11 = xla_tuple %s8, %s9, %s10
  %s12 = sld [smem:[#allocation0]]
  $region82: #{tpu_custom_call.1} parent=0
    _
  %s14 = ssub.s32 1, %s12
  %s15 = scalar_select 0, %s14, %s12
  $region1: #{tpu_custom_call.1} parent=0
    #allocation6 [shape = 'u8[1024]{0}', space=vmem, size = 0x400, scoped, tag = 'input window, operand 0, single buffered']
    #allocation7 [shape = 's32[1]{0}', space=sflag, size = 0x4, scoped, tag = 'scoped memory for tpu_custom_call.1']
    #allocation8 [shape = 's32[1]{0}', space=sflag, size = 0x4, scoped, tag = 'scoped memory for tpu_custom_call.1']
    #allocation9 [shape = 'u8[393216]{0}', space=vmem, size = 0x60000, scoped, tag = 'input window, operand 2, single buffered']
    #allocation10 [shape = 's32[1]{0}', space=sflag, size = 0x4, scoped, tag = 'scoped memory for tpu_custom_call.1']
    #allocation11 [shape = 'u8[393216]{0}', space=vmem, size = 0x60000, scoped, tag = 'input window, operand 4, single buffered']
    #allocation12 [shape = 'u8[131072]{0}', space=vmem, size = 0x20000, scoped, tag = 'input window, operand 6, single buffered']
    #allocation13 [shape = 's32[1]{0}', space=sflag, size = 0x4, scoped, tag = 'scoped memory for tpu_custom_call.1']
    #allocation14 [shape = 'u8[1024]{0}', space=vmem, size = 0x400, scoped, tag = 'output window, operand 0, single buffered']
    #allocation15 [shape = 'u8[512]{0}', space=vmem, size = 0x400, scoped, tag = 'output window, operand 1, single buffered']
    #allocation16 [shape = 's32[1]{0}', space=sflag, size = 0x4, scoped, tag = 'scoped memory for tpu_custom_call.1']
    #allocation17 [shape = 'u8[1024]{0}', space=vmem, size = 0x400, scoped, tag = 'output window, operand 2, single buffered']
    %16 = vsyncpa [#allocation7], 0
    %17 = vsyncpa [#allocation10], 0
    %18 = vsyncpa [#allocation13], 0
    %19 = vsyncpa [#allocation8], 0
    %20 = vsyncpa [#allocation16], 0
    // Predicated region
    $region2: #{tpu_custom_call.1} parent=1 // pred_check
      _
    $region3: #{tpu_custom_call.1} parent=1 // pred_check_branch
      %22 = sbr.rel (0) target = $region5
    $region4: #{tpu_custom_call.1} parent=1 // pred_region
      %s24 = ssub.s32 32, 32
      %25 = vsyncadd [#allocation7], %s24
      %s27 = sshll.u32 [#allocation6], 4
      %s28 = int_to_ptr.vmem [resolvable:$true] %s27
      %30 = dma.hbm_to_vmem [thread:$0]  %s0, 32, %s28, [#allocation7]
    $region5: #{tpu_custom_call.1} parent=1 // pred_fallthru
      _
    // Predicated region
    $region6: #{tpu_custom_call.1} parent=1 // pred_check
      _
    $region7: #{tpu_custom_call.1} parent=1 // pred_check_branch
      %32 = sbr.rel (0) target = $region9
    $region8: #{tpu_custom_call.1} parent=1 // pred_region
      _
    $region9: #{tpu_custom_call.1} parent=1 // pred_fallthru
      _
    // Predicated region
    $region10: #{tpu_custom_call.1} parent=1 // pred_check
      _
    $region11: #{tpu_custom_call.1} parent=1 // pred_check_branch
      %34 = sbr.rel (0) target = $region13
    $region12: #{tpu_custom_call.1} parent=1 // pred_region
      %s36 = ssub.s32 12288, 12288
      %37 = vsyncadd [#allocation10], %s36
      %s38 = sshll.u32 [#allocation9], 4
      %s39 = int_to_ptr.vmem [resolvable:$true] %s38
      %44 = dma.hbm_to_vmem [thread:$0]  %s2, 12288, %s39, [#allocation10], 384, 384, 24
    $region13: #{tpu_custom_call.1} parent=1 // pred_fallthru
      _
    // Predicated region
    $region14: #{tpu_custom_call.1} parent=1 // pred_check
      _
    $region15: #{tpu_custom_call.1} parent=1 // pred_check_branch
      %46 = sbr.rel (0) target = $region17
    $region16: #{tpu_custom_call.1} parent=1 // pred_region
      _
    $region17: #{tpu_custom_call.1} parent=1 // pred_fallthru
      _
    // Predicated region
    $region18: #{tpu_custom_call.1} parent=1 // pred_check
      _
    $region19: #{tpu_custom_call.1} parent=1 // pred_check_branch
      %48 = sbr.rel (0) target = $region21
    $region20: #{tpu_custom_call.1} parent=1 // pred_region
      %s50 = ssub.s32 12288, 12288
      %51 = vsyncadd [#allocation10], %s50
      %s52 = sshll.u32 [#allocation11], 4
      %s53 = int_to_ptr.vmem [resolvable:$true] %s52
      %58 = dma.hbm_to_vmem [thread:$0]  %s4, 12288, %s53, [#allocation10], 384, 384, 24
    $region21: #{tpu_custom_call.1} parent=1 // pred_fallthru
      _
    // Predicated region
    $region22: #{tpu_custom_call.1} parent=1 // pred_check
      _
    $region23: #{tpu_custom_call.1} parent=1 // pred_check_branch
      %60 = sbr.rel (0) target = $region25
    $region24: #{tpu_custom_call.1} parent=1 // pred_region
      _
    $region25: #{tpu_custom_call.1} parent=1 // pred_fallthru
      _
    // Predicated region
    $region26: #{tpu_custom_call.1} parent=1 // pred_check
      _
    $region27: #{tpu_custom_call.1} parent=1 // pred_check_branch
      %62 = sbr.rel (0) target = $region29
    $region28: #{tpu_custom_call.1} parent=1 // pred_region
      %s64 = ssub.s32 4096, 4096
      %65 = vsyncadd [#allocation13], %s64
      %s66 = sshll.u32 [#allocation12], 4
      %s67 = int_to_ptr.vmem [resolvable:$true] %s66
      %72 = dma.hbm_to_vmem [thread:$0]  %s6, 4096, %s67, [#allocation13], 128, 128, 8
    $region29: #{tpu_custom_call.1} parent=1 // pred_fallthru
      _
    // Predicated region
    $region30: #{tpu_custom_call.1} parent=1 // pred_check
      _
    $region31: #{tpu_custom_call.1} parent=1 // pred_check_branch
      %74 = sbr.rel (0) target = $region33
    $region32: #{tpu_custom_call.1} parent=1 // pred_region
      _
    $region33: #{tpu_custom_call.1} parent=1 // pred_fallthru
      _
    // Predicated region
    $region34: #{tpu_custom_call.1} parent=1 // pred_check
      _
    $region35: #{tpu_custom_call.1} parent=1 // pred_check_branch
      %76 = sbr.rel (0) target = $region37
    $region36: #{tpu_custom_call.1} parent=1 // pred_region
      %77 = dma.done [#allocation7], 32
    $region37: #{tpu_custom_call.1} parent=1 // pred_fallthru
      _
    // Predicated region
    $region38: #{tpu_custom_call.1} parent=1 // pred_check
      _
    $region39: #{tpu_custom_call.1} parent=1 // pred_check_branch
      %79 = sbr.rel (0) target = $region41
    $region40: #{tpu_custom_call.1} parent=1 // pred_region
      %80 = dma.done [#allocation10], 12288
    $region41: #{tpu_custom_call.1} parent=1 // pred_fallthru
      _
    // Predicated region
    $region42: #{tpu_custom_call.1} parent=1 // pred_check
      _
    $region43: #{tpu_custom_call.1} parent=1 // pred_check_branch
      %82 = sbr.rel (0) target = $region45
    $region44: #{tpu_custom_call.1} parent=1 // pred_region
      %83 = dma.done [#allocation10], 12288
    $region45: #{tpu_custom_call.1} parent=1 // pred_fallthru
      _
    // Predicated region
    $region46: #{tpu_custom_call.1} parent=1 // pred_check
      _
    $region47: #{tpu_custom_call.1} parent=1 // pred_check_branch
      %85 = sbr.rel (0) target = $region49
    $region48: #{tpu_custom_call.1} parent=1 // pred_region
      %86 = dma.done [#allocation13], 4096
    $region49: #{tpu_custom_call.1} parent=1 // pred_fallthru
      _
    %p87 = scmp.eq.s32.totalorder 0, 0
    // Predicated region
    $region50: #{tpu_custom_call.1} parent=1 // pred_check
      %p88 = pneg %p87
    $region51: #{tpu_custom_call.1} parent=1 // pred_check_branch
      %90 = sbr.rel (%p88) target = $region53
    $region52: #{tpu_custom_call.1} parent=1 // pred_region
      %v91 = vld [vmem:[#allocation6] sm:$0x3]
      %v92 = vld [vmem:[#allocation9] sm:$0xff]
      %v93 = vld [vmem:[#allocation9 + $0x8] sm:$0xff]
      %v94 = vld [vmem:[#allocation9 + $0x10] sm:$0xff]
      %v95 = vld [vmem:[#allocation9 + $0x18] sm:$0xff]
      %v96 = vld [vmem:[#allocation9 + $0x20] sm:$0xff]
      %v97 = vld [vmem:[#allocation9 + $0x28] sm:$0xff]
      %v98 = vld [vmem:[#allocation9 + $0x30] sm:$0xff]
      %v99 = vld [vmem:[#allocation9 + $0x38] sm:$0xff]
      %v100 = vld [vmem:[#allocation9 + $0x40] sm:$0xff]
      %v101 = vld [vmem:[#allocation9 + $0x48] sm:$0xff]
      %v102 = vld [vmem:[#allocation9 + $0x50] sm:$0xff]
      %v103 = vld [vmem:[#allocation9 + $0x58] sm:$0xff]
      %v104 = vld [vmem:[#allocation9 + $0x60] sm:$0xff]
      %v105 = vld [vmem:[#allocation9 + $0x68] sm:$0xff]
      %v106 = vld [vmem:[#allocation9 + $0x70] sm:$0xff]
      %v107 = vld [vmem:[#allocation9 + $0x78] sm:$0xff]
      %v108 = vld [vmem:[#allocation9 + $0x80] sm:$0xff]
      %v109 = vld [vmem:[#allocation9 + $0x88] sm:$0xff]
      %v110 = vld [vmem:[#allocation9 + $0x90] sm:$0xff]
      %v111 = vld [vmem:[#allocation9 + $0x98] sm:$0xff]
      %v112 = vld [vmem:[#allocation9 + $0xa0] sm:$0xff]
      %v113 = vld [vmem:[#allocation9 + $0xa8] sm:$0xff]
      %v114 = vld [vmem:[#allocation9 + $0xb0] sm:$0xff]
      %v115 = vld [vmem:[#allocation9 + $0xb8] sm:$0xff]
      %v116 = vld [vmem:[#allocation9 + $0xc0] sm:$0xff]
      %v117 = vld [vmem:[#allocation9 + $0xc8] sm:$0xff]
      %v118 = vld [vmem:[#allocation9 + $0xd0] sm:$0xff]
      %v119 = vld [vmem:[#allocation9 + $0xd8] sm:$0xff]
      %v120 = vld [vmem:[#allocation9 + $0xe0] sm:$0xff]
      %v121 = vld [vmem:[#allocation9 + $0xe8] sm:$0xff]
      %v122 = vld [vmem:[#allocation9 + $0xf0] sm:$0xff]
      %v123 = vld [vmem:[#allocation9 + $0xf8] sm:$0xff]
      %v124 = vld [vmem:[#allocation9 + $0x100] sm:$0xff]
      %v125 = vld [vmem:[#allocation9 + $0x108] sm:$0xff]
      %v126 = vld [vmem:[#allocation9 + $0x110] sm:$0xff]
      %v127 = vld [vmem:[#allocation9 + $0x118] sm:$0xff]
      %v128 = vld [vmem:[#allocation9 + $0x120] sm:$0xff]
      %v129 = vld [vmem:[#allocation9 + $0x128] sm:$0xff]
      %v130 = vld [vmem:[#allocation9 + $0x130] sm:$0xff]
      %v131 = vld [vmem:[#allocation9 + $0x138] sm:$0xff]
      %v132 = vld [vmem:[#allocation9 + $0x140] sm:$0xff]
      %v133 = vld [vmem:[#allocation9 + $0x148] sm:$0xff]
      %v134 = vld [vmem:[#allocation9 + $0x150] sm:$0xff]
      %v135 = vld [vmem:[#allocation9 + $0x158] sm:$0xff]
      %v136 = vld [vmem:[#allocation9 + $0x160] sm:$0xff]
      %v137 = vld [vmem:[#allocation9 + $0x168] sm:$0xff]
      %v138 = vld [vmem:[#allocation9 + $0x170] sm:$0xff]
      %v139 = vld [vmem:[#allocation9 + $0x178] sm:$0xff]
      %v140 = vld [vmem:[#allocation9 + $0x180] sm:$0xff]
      %v141 = vld [vmem:[#allocation9 + $0x188] sm:$0xff]
      %v142 = vld [vmem:[#allocation9 + $0x190] sm:$0xff]
      %v143 = vld [vmem:[#allocation9 + $0x198] sm:$0xff]
      %v144 = vld [vmem:[#allocation9 + $0x1a0] sm:$0xff]
      %v145 = vld [vmem:[#allocation9 + $0x1a8] sm:$0xff]
      %v146 = vld [vmem:[#allocation9 + $0x1b0] sm:$0xff]
      %v147 = vld [vmem:[#allocation9 + $0x1b8] sm:$0xff]
      %v148 = vld [vmem:[#allocation9 + $0x1c0] sm:$0xff]
      %v149 = vld [vmem:[#allocation9 + $0x1c8] sm:$0xff]
      %v150 = vld [vmem:[#allocation9 + $0x1d0] sm:$0xff]
      %v151 = vld [vmem:[#allocation9 + $0x1d8] sm:$0xff]
      %v152 = vld [vmem:[#allocation9 + $0x1e0] sm:$0xff]
      %v153 = vld [vmem:[#allocation9 + $0x1e8] sm:$0xff]
      %v154 = vld [vmem:[#allocation9 + $0x1f0] sm:$0xff]
      %v155 = vld [vmem:[#allocation9 + $0x1f8] sm:$0xff]
      %v156 = vld [vmem:[#allocation9 + $0x200] sm:$0xff]
      %v157 = vld [vmem:[#allocation9 + $0x208] sm:$0xff]
      %v158 = vld [vmem:[#allocation9 + $0x210] sm:$0xff]
      %v159 = vld [vmem:[#allocation9 + $0x218] sm:$0xff]
      %v160 = vld [vmem:[#allocation9 + $0x220] sm:$0xff]
      %v161 = vld [vmem:[#allocation9 + $0x228] sm:$0xff]
      %v162 = vld [vmem:[#allocation9 + $0x230] sm:$0xff]
      %v163 = vld [vmem:[#allocation9 + $0x238] sm:$0xff]
      %v164 = vld [vmem:[#allocation9 + $0x240] sm:$0xff]
      %v165 = vld [vmem:[#allocation9 + $0x248] sm:$0xff]
      %v166 = vld [vmem:[#allocation9 + $0x250] sm:$0xff]
      %v167 = vld [vmem:[#allocation9 + $0x258] sm:$0xff]
      %v168 = vld [vmem:[#allocation9 + $0x260] sm:$0xff]
      %v169 = vld [vmem:[#allocation9 + $0x268] sm:$0xff]
      %v170 = vld [vmem:[#allocation9 + $0x270] sm:$0xff]
      %v171 = vld [vmem:[#allocation9 + $0x278] sm:$0xff]
      %v172 = vld [vmem:[#allocation9 + $0x280] sm:$0xff]
      %v173 = vld [vmem:[#allocation9 + $0x288] sm:$0xff]
      %v174 = vld [vmem:[#allocation9 + $0x290] sm:$0xff]
      %v175 = vld [vmem:[#allocation9 + $0x298] sm:$0xff]
      %v176 = vld [vmem:[#allocation9 + $0x2a0] sm:$0xff]
      %v177 = vld [vmem:[#allocation9 + $0x2a8] sm:$0xff]
      %v178 = vld [vmem:[#allocation9 + $0x2b0] sm:$0xff]
      %v179 = vld [vmem:[#allocation9 + $0x2b8] sm:$0xff]
      %v180 = vld [vmem:[#allocation9 + $0x2c0] sm:$0xff]
      %v181 = vld [vmem:[#allocation9 + $0x2c8] sm:$0xff]
      %v182 = vld [vmem:[#allocation9 + $0x2d0] sm:$0xff]
      %v183 = vld [vmem:[#allocation9 + $0x2d8] sm:$0xff]
      %v184 = vld [vmem:[#allocation9 + $0x2e0] sm:$0xff]
      %v185 = vld [vmem:[#allocation9 + $0x2e8] sm:$0xff]
      %v186 = vld [vmem:[#allocation9 + $0x2f0] sm:$0xff]
      %v187 = vld [vmem:[#allocation9 + $0x2f8] sm:$0xff]
      %v188 = vld [vmem:[%s3] sm:$0x3f]
      %v191 = vunpack.c.l.s4 1966171168
      %v192 = vunpack.c.0.s8 %v191
      %v193 = vlaneseq
      %v194 = vshrl.u32 %v193, 7
      %v195 = vsub.s32 %v192, %v194
      %v196 = vrot.slane %v91, %v195
      %v197 = vcombine.high %v196, %v196
      %v199 = vunpack.c.l.s4 1966171168
      %v200 = vunpack.c.0.s8 %v199
      %v201 = vlaneseq
      %v202 = vshrl.u32 %v201, 7
      %v203 = vsub.s32 %v200, %v202
      %v204 = vrot.slane %v196, %v203
      %v206 = vunpack.c.l.s4 1966171168
      %v207 = vunpack.c.0.s8 %v206
      %v208 = vlaneseq
      %v209 = vshrl.u32 %v208, 7
      %v210 = vsub.s32 %v207, %v209
      %v211 = vrot.slane %v197, %v210
      %v310 = vunpack.c.l.b16 %v92
      %v311 = vunpack.c.h.b16 %v92
      %v312 = vunpack.c.l.b16 %v93
      %v313 = vunpack.c.h.b16 %v93
      %v314 = vunpack.c.l.b16 %v94
      %v315 = vunpack.c.h.b16 %v94
      %v316 = vunpack.c.l.b16 %v95
      %v317 = vunpack.c.h.b16 %v95
      %v318 = vunpack.c.l.b16 %v96
      %v319 = vunpack.c.h.b16 %v96
      %v320 = vunpack.c.l.b16 %v97
      %v321 = vunpack.c.h.b16 %v97
      %v322 = vunpack.c.l.b16 %v98
      %v323 = vunpack.c.h.b16 %v98
      %v324 = vunpack.c.l.b16 %v99
      %v325 = vunpack.c.h.b16 %v99
      %v326 = vunpack.c.l.b16 %v100
      %v327 = vunpack.c.h.b16 %v100
      %v328 = vunpack.c.l.b16 %v101
      %v329 = vunpack.c.h.b16 %v101
      %v330 = vunpack.c.l.b16 %v102
      %v331 = vunpack.c.h.b16 %v102
      %v332 = vunpack.c.l.b16 %v103
      %v333 = vunpack.c.h.b16 %v103
      %v334 = vunpack.c.l.b16 %v104
      %v335 = vunpack.c.h.b16 %v104
      %v336 = vunpack.c.l.b16 %v105
      %v337 = vunpack.c.h.b16 %v105
      %v338 = vunpack.c.l.b16 %v106
      %v339 = vunpack.c.h.b16 %v106
      %v340 = vunpack.c.l.b16 %v107
      %v341 = vunpack.c.h.b16 %v107
      %v342 = vunpack.c.l.b16 %v108
      %v343 = vunpack.c.h.b16 %v108
      %v344 = vunpack.c.l.b16 %v109
      %v345 = vunpack.c.h.b16 %v109
      %v346 = vunpack.c.l.b16 %v110
      %v347 = vunpack.c.h.b16 %v110
      %v348 = vunpack.c.l.b16 %v111
      %v349 = vunpack.c.h.b16 %v111
      %v350 = vunpack.c.l.b16 %v112
      %v351 = vunpack.c.h.b16 %v112
      %v352 = vunpack.c.l.b16 %v113
      %v353 = vunpack.c.h.b16 %v113
      %v354 = vunpack.c.l.b16 %v114
      %v355 = vunpack.c.h.b16 %v114
      %v356 = vunpack.c.l.b16 %v115
      %v357 = vunpack.c.h.b16 %v115
      %v358 = vunpack.c.l.b16 %v116
      %v359 = vunpack.c.h.b16 %v116
      %v360 = vunpack.c.l.b16 %v117
      %v361 = vunpack.c.h.b16 %v117
      %v362 = vunpack.c.l.b16 %v118
      %v363 = vunpack.c.h.b16 %v118
      %v364 = vunpack.c.l.b16 %v119
      %v365 = vunpack.c.h.b16 %v119
      %v366 = vunpack.c.l.b16 %v120
      %v367 = vunpack.c.h.b16 %v120
      %v368 = vunpack.c.l.b16 %v121
      %v369 = vunpack.c.h.b16 %v121
      %v370 = vunpack.c.l.b16 %v122
      %v371 = vunpack.c.h.b16 %v122
      %v372 = vunpack.c.l.b16 %v123
      %v373 = vunpack.c.h.b16 %v123
      %v374 = vunpack.c.l.b16 %v124
      %v375 = vunpack.c.h.b16 %v124
      %v376 = vunpack.c.l.b16 %v125
      %v377 = vunpack.c.h.b16 %v125
      %v378 = vunpack.c.l.b16 %v126
      %v379 = vunpack.c.h.b16 %v126
      %v380 = vunpack.c.l.b16 %v127
      %v381 = vunpack.c.h.b16 %v127
      %v382 = vunpack.c.l.b16 %v128
      %v383 = vunpack.c.h.b16 %v128
      %v384 = vunpack.c.l.b16 %v129
      %v385 = vunpack.c.h.b16 %v129
      %v386 = vunpack.c.l.b16 %v130
      %v387 = vunpack.c.h.b16 %v130
      %v388 = vunpack.c.l.b16 %v131
      %v389 = vunpack.c.h.b16 %v131
      %v390 = vunpack.c.l.b16 %v132
      %v391 = vunpack.c.h.b16 %v132
      %v392 = vunpack.c.l.b16 %v133
      %v393 = vunpack.c.h.b16 %v133
      %v394 = vunpack.c.l.b16 %v134
      %v395 = vunpack.c.h.b16 %v134
      %v396 = vunpack.c.l.b16 %v135
      %v397 = vunpack.c.h.b16 %v135
      %v398 = vunpack.c.l.b16 %v136
      %v399 = vunpack.c.h.b16 %v136
      %v400 = vunpack.c.l.b16 %v137
      %v401 = vunpack.c.h.b16 %v137
      %v402 = vunpack.c.l.b16 %v138
      %v403 = vunpack.c.h.b16 %v138
      %v404 = vunpack.c.l.b16 %v139
      %v405 = vunpack.c.h.b16 %v139
      %v406 = vunpack.c.l.b16 %v140
      %v407 = vunpack.c.h.b16 %v140
      %v408 = vunpack.c.l.b16 %v141
      %v409 = vunpack.c.h.b16 %v141
      %v410 = vunpack.c.l.b16 %v142
      %v411 = vunpack.c.h.b16 %v142
      %v412 = vunpack.c.l.b16 %v143
      %v413 = vunpack.c.h.b16 %v143
      %v414 = vunpack.c.l.b16 %v144
      %v415 = vunpack.c.h.b16 %v144
      %v416 = vunpack.c.l.b16 %v145
      %v417 = vunpack.c.h.b16 %v145
      %v418 = vunpack.c.l.b16 %v146
      %v419 = vunpack.c.h.b16 %v146
      %v420 = vunpack.c.l.b16 %v147
      %v421 = vunpack.c.h.b16 %v147
      %v422 = vunpack.c.l.b16 %v148
      %v423 = vunpack.c.h.b16 %v148
      %v424 = vunpack.c.l.b16 %v149
      %v425 = vunpack.c.h.b16 %v149
      %v426 = vunpack.c.l.b16 %v150
      %v427 = vunpack.c.h.b16 %v150
      %v428 = vunpack.c.l.b16 %v151
      %v429 = vunpack.c.h.b16 %v151
      %v430 = vunpack.c.l.b16 %v152
      %v431 = vunpack.c.h.b16 %v152
      %v432 = vunpack.c.l.b16 %v153
      %v433 = vunpack.c.h.b16 %v153
      %v434 = vunpack.c.l.b16 %v154
      %v435 = vunpack.c.h.b16 %v154
      %v436 = vunpack.c.l.b16 %v155
      %v437 = vunpack.c.h.b16 %v155
      %v438 = vunpack.c.l.b16 %v156
      %v439 = vunpack.c.h.b16 %v156
      %v440 = vunpack.c.l.b16 %v157
      %v441 = vunpack.c.h.b16 %v157
      %v442 = vunpack.c.l.b16 %v158
      %v443 = vunpack.c.h.b16 %v158
      %v444 = vunpack.c.l.b16 %v159
      %v445 = vunpack.c.h.b16 %v159
      %v446 = vunpack.c.l.b16 %v160
      %v447 = vunpack.c.h.b16 %v160
      %v448 = vunpack.c.l.b16 %v161
      %v449 = vunpack.c.h.b16 %v161
      %v450 = vunpack.c.l.b16 %v162
      %v451 = vunpack.c.h.b16 %v162
      %v452 = vunpack.c.l.b16 %v163
      %v453 = vunpack.c.h.b16 %v163
      %v454 = vunpack.c.l.b16 %v164
      %v455 = vunpack.c.h.b16 %v164
      %v456 = vunpack.c.l.b16 %v165
      %v457 = vunpack.c.h.b16 %v165
      %v458 = vunpack.c.l.b16 %v166
      %v459 = vunpack.c.h.b16 %v166
      %v460 = vunpack.c.l.b16 %v167
      %v461 = vunpack.c.h.b16 %v167
      %v462 = vunpack.c.l.b16 %v168
      %v463 = vunpack.c.h.b16 %v168
      %v464 = vunpack.c.l.b16 %v169
      %v465 = vunpack.c.h.b16 %v169
      %v466 = vunpack.c.l.b16 %v170
      %v467 = vunpack.c.h.b16 %v170
      %v468 = vunpack.c.l.b16 %v171
      %v469 = vunpack.c.h.b16 %v171
      %v470 = vunpack.c.l.b16 %v172
      %v471 = vunpack.c.h.b16 %v172
      %v472 = vunpack.c.l.b16 %v173
      %v473 = vunpack.c.h.b16 %v173
      %v474 = vunpack.c.l.b16 %v174
      %v475 = vunpack.c.h.b16 %v174
      %v476 = vunpack.c.l.b16 %v175
      %v477 = vunpack.c.h.b16 %v175
      %v478 = vunpack.c.l.b16 %v176
      %v479 = vunpack.c.h.b16 %v176
      %v480 = vunpack.c.l.b16 %v177
      %v481 = vunpack.c.h.b16 %v177
      %v482 = vunpack.c.l.b16 %v178
      %v483 = vunpack.c.h.b16 %v178
      %v484 = vunpack.c.l.b16 %v179
      %v485 = vunpack.c.h.b16 %v179
      %v486 = vunpack.c.l.b16 %v180
      %v487 = vunpack.c.h.b16 %v180
      %v488 = vunpack.c.l.b16 %v181
      %v489 = vunpack.c.h.b16 %v181
      %v490 = vunpack.c.l.b16 %v182
      %v491 = vunpack.c.h.b16 %v182
      %v492 = vunpack.c.l.b16 %v183
      %v493 = vunpack.c.h.b16 %v183
      %v494 = vunpack.c.l.b16 %v184
      %v495 = vunpack.c.h.b16 %v184
      %v496 = vunpack.c.l.b16 %v185
      %v497 = vunpack.c.h.b16 %v185
      %v498 = vunpack.c.l.b16 %v186
      %v499 = vunpack.c.h.b16 %v186
      %v500 = vunpack.c.l.b16 %v187
      %v501 = vunpack.c.h.b16 %v187
      %v502 = vpack.c.b16 %v316, %v310
      %v503 = vpack.c.b16 %v317, %v311
      %v504 = vpack.c.b16 %v318, %v312
      %v505 = vpack.c.b16 %v319, %v313
      %v506 = vpack.c.b16 %v320, %v314
      %v507 = vpack.c.b16 %v321, %v315
      %v508 = vpack.c.b16 %v328, %v322
      %v509 = vpack.c.b16 %v329, %v323
      %v510 = vpack.c.b16 %v330, %v324
      %v511 = vpack.c.b16 %v331, %v325
      %v512 = vpack.c.b16 %v332, %v326
      %v513 = vpack.c.b16 %v333, %v327
      %v514 = vpack.c.b16 %v340, %v334
      %v515 = vpack.c.b16 %v341, %v335
      %v516 = vpack.c.b16 %v342, %v336
      %v517 = vpack.c.b16 %v343, %v337
      %v518 = vpack.c.b16 %v344, %v338
      %v519 = vpack.c.b16 %v345, %v339
      %v520 = vpack.c.b16 %v352, %v346
      %v521 = vpack.c.b16 %v353, %v347
      %v522 = vpack.c.b16 %v354, %v348
      %v523 = vpack.c.b16 %v355, %v349
      %v524 = vpack.c.b16 %v356, %v350
      %v525 = vpack.c.b16 %v357, %v351
      %v526 = vpack.c.b16 %v364, %v358
      %v527 = vpack.c.b16 %v365, %v359
      %v528 = vpack.c.b16 %v366, %v360
      %v529 = vpack.c.b16 %v367, %v361
      %v530 = vpack.c.b16 %v368, %v362
      %v531 = vpack.c.b16 %v369, %v363
      %v532 = vpack.c.b16 %v376, %v370
      %v533 = vpack.c.b16 %v377, %v371
      %v534 = vpack.c.b16 %v378, %v372
      %v535 = vpack.c.b16 %v379, %v373
      %v536 = vpack.c.b16 %v380, %v374
      %v537 = vpack.c.b16 %v381, %v375
      %v538 = vpack.c.b16 %v388, %v382
      %v539 = vpack.c.b16 %v389, %v383
      %v540 = vpack.c.b16 %v390, %v384
      %v541 = vpack.c.b16 %v391, %v385
      %v542 = vpack.c.b16 %v392, %v386
      %v543 = vpack.c.b16 %v393, %v387
      %v544 = vpack.c.b16 %v400, %v394
      %v545 = vpack.c.b16 %v401, %v395
      %v546 = vpack.c.b16 %v402, %v396
      %v547 = vpack.c.b16 %v403, %v397
      %v548 = vpack.c.b16 %v404, %v398
      %v549 = vpack.c.b16 %v405, %v399
      %v550 = vpack.c.b16 %v412, %v406
      %v551 = vpack.c.b16 %v413, %v407
      %v552 = vpack.c.b16 %v414, %v408
      %v553 = vpack.c.b16 %v415, %v409
      %v554 = vpack.c.b16 %v416, %v410
      %v555 = vpack.c.b16 %v417, %v411
      %v556 = vpack.c.b16 %v424, %v418
      %v557 = vpack.c.b16 %v425, %v419
      %v558 = vpack.c.b16 %v426, %v420
      %v559 = vpack.c.b16 %v427, %v421
      %v560 = vpack.c.b16 %v428, %v422
      %v561 = vpack.c.b16 %v429, %v423
      %v562 = vpack.c.b16 %v436, %v430
      %v563 = vpack.c.b16 %v437, %v431
      %v564 = vpack.c.b16 %v438, %v432
      %v565 = vpack.c.b16 %v439, %v433
      %v566 = vpack.c.b16 %v440, %v434
      %v567 = vpack.c.b16 %v441, %v435
      %v568 = vpack.c.b16 %v448, %v442
      %v569 = vpack.c.b16 %v449, %v443
      %v570 = vpack.c.b16 %v450, %v444
      %v571 = vpack.c.b16 %v451, %v445
      %v572 = vpack.c.b16 %v452, %v446
      %v573 = vpack.c.b16 %v453, %v447
      %v574 = vpack.c.b16 %v460, %v454
      %v575 = vpack.c.b16 %v461, %v455
      %v576 = vpack.c.b16 %v462, %v456
      %v577 = vpack.c.b16 %v463, %v457
      %v578 = vpack.c.b16 %v464, %v458
      %v579 = vpack.c.b16 %v465, %v459
      %v580 = vpack.c.b16 %v472, %v466
      %v581 = vpack.c.b16 %v473, %v467
      %v582 = vpack.c.b16 %v474, %v468
      %v583 = vpack.c.b16 %v475, %v469
      %v584 = vpack.c.b16 %v476, %v470
      %v585 = vpack.c.b16 %v477, %v471
      %v586 = vpack.c.b16 %v484, %v478
      %v587 = vpack.c.b16 %v485, %v479
      %v588 = vpack.c.b16 %v486, %v480
      %v589 = vpack.c.b16 %v487, %v481
      %v590 = vpack.c.b16 %v488, %v482
      %v591 = vpack.c.b16 %v489, %v483
      %v592 = vpack.c.b16 %v496, %v490
      %v593 = vpack.c.b16 %v497, %v491
      %v594 = vpack.c.b16 %v498, %v492
      %v595 = vpack.c.b16 %v499, %v493
      %v596 = vpack.c.b16 %v500, %v494
      %v597 = vpack.c.b16 %v501, %v495
      %v695 = vlaneseq
      %v696 = vshrl.u32 %v695, 7
      %v697 = vsub.s32 0, %v696
      %v698 = vrot.slane %v188, %v697
      %v699 = vlaneseq
      %v700 = vshrl.u32 %v699, 7
      %v701 = vsub.s32 1, %v700
      %v702 = vrot.slane %v188, %v701
      %v703 = vlaneseq
      %v704 = vshrl.u32 %v703, 7
      %v705 = vsub.s32 2, %v704
      %v706 = vrot.slane %v188, %v705
      %v707 = vlaneseq
      %v708 = vshrl.u32 %v707, 7
      %v709 = vsub.s32 3, %v708
      %v710 = vrot.slane %v188, %v709
      %v711 = vlaneseq
      %v712 = vshrl.u32 %v711, 7
      %v713 = vsub.s32 4, %v712
      %v714 = vrot.slane %v188, %v713
      %v715 = vlaneseq
      %v716 = vshrl.u32 %v715, 7
      %v717 = vsub.s32 5, %v716
      %v718 = vrot.slane %v188, %v717
      %725 = vmatprep.subr.bf16.mxu0 %v503
      %726 = vmatpush1.bf16.msra.mxu0 %v502
      %727 = vmatprep.subr.bf16.mxu0 %v509
      %728 = vmatpush1.bf16.msra.mxu0 %v508
      %729 = vmatprep.subr.bf16.mxu0 %v515
      %730 = vmatpush1.bf16.msra.mxu0 %v514
      %731 = vmatprep.subr.bf16.mxu0 %v521
      %732 = vmatpush1.bf16.msra.mxu0 %v520
      %733 = vmatprep.subr.bf16.mxu0 %v527
      %734 = vmatpush1.bf16.msra.mxu0 %v526
      %735 = vmatprep.subr.bf16.mxu0 %v533
      %736 = vmatpush1.bf16.msra.mxu0 %v532
      %737 = vmatprep.subr.bf16.mxu0 %v539
      %738 = vmatpush1.bf16.msra.mxu0 %v538
      %739 = vmatprep.subr.bf16.mxu0 %v545
      %740 = vmatpush1.bf16.msra.mxu0 %v544
      %741 = vmatprep.subr.bf16.mxu0 %v551
      %742 = vmatpush1.bf16.msra.mxu0 %v550
      %743 = vmatprep.subr.bf16.mxu0 %v557
      %744 = vmatpush1.bf16.msra.mxu0 %v556
      %745 = vmatprep.subr.bf16.mxu0 %v563
      %746 = vmatpush1.bf16.msra.mxu0 %v562
      %747 = vmatprep.subr.bf16.mxu0 %v569
      %748 = vmatpush1.bf16.msra.mxu0 %v568
      %749 = vmatprep.subr.bf16.mxu0 %v575
      %750 = vmatpush1.bf16.msra.mxu0 %v574
      %751 = vmatprep.subr.bf16.mxu0 %v581
      %752 = vmatpush1.bf16.msra.mxu0 %v580
      %753 = vmatprep.subr.bf16.mxu0 %v587
      %754 = vmatpush1.bf16.msra.mxu0 %v586
      %755 = vmatprep.subr.bf16.mxu0 %v593
      %756 = vmatpush1.bf16.msra.mxu0 %v592
      %757 = vmatprep.mubr.bf16.mxu0 %v211
      %758 = vmatmul.mubr.bf16.gmra.mrb[0].mxu0 %v204
      %v759 = vpop.f32.mrb[0].mxu0
      %v760 = vadd.f32 %v698, %v759
      %v761 = vpop.f32.mrb[0].mxu0
      %v762 = vadd.f32 %v702, %v761
      %v763 = vpop.f32.mrb[0].mxu0
      %v764 = vpop.f32.mrb[0].mxu0
      %765 = vdwg.mxu0
      %766 = vmatprep.subr.bf16.mxu0 %v505
      %767 = vmatpush1.bf16.msra.mxu0 %v504
      %768 = vmatprep.subr.bf16.mxu0 %v511
      %769 = vmatpush1.bf16.msra.mxu0 %v510
      %770 = vmatprep.subr.bf16.mxu0 %v517
      %771 = vmatpush1.bf16.msra.mxu0 %v516
      %772 = vmatprep.subr.bf16.mxu0 %v523
      %773 = vmatpush1.bf16.msra.mxu0 %v522
      %774 = vmatprep.subr.bf16.mxu0 %v529
      %775 = vmatpush1.bf16.msra.mxu0 %v528
      %776 = vmatprep.subr.bf16.mxu0 %v535
      %777 = vmatpush1.bf16.msra.mxu0 %v534
      %778 = vmatprep.subr.bf16.mxu0 %v541
      %779 = vmatpush1.bf16.msra.mxu0 %v540
      %780 = vmatprep.subr.bf16.mxu0 %v547
      %781 = vmatpush1.bf16.msra.mxu0 %v546
      %782 = vmatprep.subr.bf16.mxu0 %v553
      %783 = vmatpush1.bf16.msra.mxu0 %v552
      %784 = vmatprep.subr.bf16.mxu0 %v559
      %785 = vmatpush1.bf16.msra.mxu0 %v558
      %786 = vmatprep.subr.bf16.mxu0 %v565
      %787 = vmatpush1.bf16.msra.mxu0 %v564
      %788 = vmatprep.subr.bf16.mxu0 %v571
      %789 = vmatpush1.bf16.msra.mxu0 %v570
      %790 = vmatprep.subr.bf16.mxu0 %v577
      %791 = vmatpush1.bf16.msra.mxu0 %v576
      %792 = vmatprep.subr.bf16.mxu0 %v583
      %793 = vmatpush1.bf16.msra.mxu0 %v582
      %794 = vmatprep.subr.bf16.mxu0 %v589
      %795 = vmatpush1.bf16.msra.mxu0 %v588
      %796 = vmatprep.subr.bf16.mxu0 %v595
      %797 = vmatpush1.bf16.msra.mxu0 %v594
      %798 = vmatprep.mubr.bf16.mxu0 %v211
      %799 = vmatmul.mubr.bf16.gmra.mrb[0].mxu0 %v204
      %v800 = vpop.f32.mrb[0].mxu0
      %v801 = vadd.f32 %v706, %v800
      %v802 = vpop.f32.mrb[0].mxu0
      %v803 = vadd.f32 %v710, %v802
      %v804 = vpop.f32.mrb[0].mxu0
      %v805 = vpop.f32.mrb[0].mxu0
      %806 = vdwg.mxu0
      %807 = vmatprep.subr.bf16.mxu0 %v507
      %808 = vmatpush1.bf16.msra.mxu0 %v506
      %809 = vmatprep.subr.bf16.mxu0 %v513
      %810 = vmatpush1.bf16.msra.mxu0 %v512
      %811 = vmatprep.subr.bf16.mxu0 %v519
      %812 = vmatpush1.bf16.msra.mxu0 %v518
      %813 = vmatprep.subr.bf16.mxu0 %v525
      %814 = vmatpush1.bf16.msra.mxu0 %v524
      %815 = vmatprep.subr.bf16.mxu0 %v531
      %816 = vmatpush1.bf16.msra.mxu0 %v530
      %817 = vmatprep.subr.bf16.mxu0 %v537
      %818 = vmatpush1.bf16.msra.mxu0 %v536
      %819 = vmatprep.subr.bf16.mxu0 %v543
      %820 = vmatpush1.bf16.msra.mxu0 %v542
      %821 = vmatprep.subr.bf16.mxu0 %v549
      %822 = vmatpush1.bf16.msra.mxu0 %v548
      %823 = vmatprep.subr.bf16.mxu0 %v555
      %824 = vmatpush1.bf16.msra.mxu0 %v554
      %825 = vmatprep.subr.bf16.mxu0 %v561
      %826 = vmatpush1.bf16.msra.mxu0 %v560
      %827 = vmatprep.subr.bf16.mxu0 %v567
      %828 = vmatpush1.bf16.msra.mxu0 %v566
      %829 = vmatprep.subr.bf16.mxu0 %v573
      %830 = vmatpush1.bf16.msra.mxu0 %v572
      %831 = vmatprep.subr.bf16.mxu0 %v579
      %832 = vmatpush1.bf16.msra.mxu0 %v578
      %833 = vmatprep.subr.bf16.mxu0 %v585
      %834 = vmatpush1.bf16.msra.mxu0 %v584
      %835 = vmatprep.subr.bf16.mxu0 %v591
      %836 = vmatpush1.bf16.msra.mxu0 %v590
      %837 = vmatprep.subr.bf16.mxu0 %v597
      %838 = vmatpush1.bf16.msra.mxu0 %v596
      %839 = vmatprep.mubr.bf16.mxu0 %v211
      %840 = vmatmul.mubr.bf16.gmra.mrb[0].mxu0 %v204
      %v841 = vpop.f32.mrb[0].mxu0
      %v842 = vadd.f32 %v714, %v841
      %v843 = vpop.f32.mrb[0].mxu0
      %v844 = vadd.f32 %v718, %v843
      %v845 = vpop.f32.mrb[0].mxu0
      %v846 = vpop.f32.mrb[0].mxu0
      %847 = vdwg.mxu0
      %v854 = vcombine.low %v760, %v762
      %v855 = vcombine.low %v801, %v803
      %v856 = vcombine.low %v842, %v844
      %v858 = vunpack.c.l.s4 1966171168
      %v859 = vunpack.c.0.s8 %v858
      %v860 = vlaneseq
      %v861 = vshrl.u32 %v860, 7
      %v862 = vsub.s32 %v859, %v861
      %v863 = vrot.slane %v854, %v862
      %v865 = vunpack.c.l.s4 1966171168
      %v866 = vunpack.c.0.s8 %v865
      %v867 = vlaneseq
      %v868 = vshrl.u32 %v867, 7
      %v869 = vsub.s32 %v866, %v868
      %v870 = vrot.slane %v855, %v869
      %v872 = vunpack.c.l.s4 1966171168
      %v873 = vunpack.c.0.s8 %v872
      %v874 = vlaneseq
      %v875 = vshrl.u32 %v874, 7
      %v876 = vsub.s32 %v873, %v875
      %v877 = vrot.slane %v856, %v876
      %v878 = vcombine.low %v863, %v870
      %v880 = vunpack.c.l.s4 1966171168
      %v881 = vunpack.c.0.s8 %v880
      %v882 = vlaneseq
      %v883 = vshrl.u32 %v882, 7
      %v884 = vsub.s32 %v881, %v883
      %v885 = vrot.slane %v878, %v884
      %v887 = vunpack.c.l.s4 1966171168
      %v888 = vunpack.c.0.s8 %v887
      %v889 = vlaneseq
      %v890 = vshrl.u32 %v889, 7
      %v891 = vsub.s32 %v888, %v890
      %v892 = vrot.slane %v877, %v891
      %v893 = vcombine.low %v885, %v892
      %v895 = vlaneseq
      %vm896 = vcmp.ge.s32.totalorder %v895, 0
      %vm897 = vcmp.lt.s32.totalorder %v895, 768
      %vm898 = vmand %vm896, %vm897
      %899 = vst.msk [vmem:[#allocation2] sm:$0x3f] %vm898, %v893
      %v900 = vld [vmem:[#allocation11] sm:$0xff]
      %v901 = vld [vmem:[#allocation11 + $0x8] sm:$0xff]
      %v902 = vld [vmem:[#allocation11 + $0x10] sm:$0xff]
      %v903 = vld [vmem:[#allocation11 + $0x18] sm:$0xff]
      %v904 = vld [vmem:[#allocation11 + $0x20] sm:$0xff]
      %v905 = vld [vmem:[#allocation11 + $0x28] sm:$0xff]
      %v906 = vld [vmem:[#allocation11 + $0x30] sm:$0xff]
      %v907 = vld [vmem:[#allocation11 + $0x38] sm:$0xff]
      %v908 = vld [vmem:[#allocation11 + $0x40] sm:$0xff]
      %v909 = vld [vmem:[#allocation11 + $0x48] sm:$0xff]
      %v910 = vld [vmem:[#allocation11 + $0x50] sm:$0xff]
      %v911 = vld [vmem:[#allocation11 + $0x58] sm:$0xff]
      %v912 = vld [vmem:[#allocation11 + $0x60] sm:$0xff]
      %v913 = vld [vmem:[#allocation11 + $0x68] sm:$0xff]
      %v914 = vld [vmem:[#allocation11 + $0x70] sm:$0xff]
      %v915 = vld [vmem:[#allocation11 + $0x78] sm:$0xff]
      %v916 = vld [vmem:[#allocation11 + $0x80] sm:$0xff]
      %v917 = vld [vmem:[#allocation11 + $0x88] sm:$0xff]
      %v918 = vld [vmem:[#allocation11 + $0x90] sm:$0xff]
      %v919 = vld [vmem:[#allocation11 + $0x98] sm:$0xff]
      %v920 = vld [vmem:[#allocation11 + $0xa0] sm:$0xff]
      %v921 = vld [vmem:[#allocation11 + $0xa8] sm:$0xff]
      %v922 = vld [vmem:[#allocation11 + $0xb0] sm:$0xff]
      %v923 = vld [vmem:[#allocation11 + $0xb8] sm:$0xff]
      %v924 = vld [vmem:[#allocation11 + $0xc0] sm:$0xff]
      %v925 = vld [vmem:[#allocation11 + $0xc8] sm:$0xff]
      %v926 = vld [vmem:[#allocation11 + $0xd0] sm:$0xff]
      %v927 = vld [vmem:[#allocation11 + $0xd8] sm:$0xff]
      %v928 = vld [vmem:[#allocation11 + $0xe0] sm:$0xff]
      %v929 = vld [vmem:[#allocation11 + $0xe8] sm:$0xff]
      %v930 = vld [vmem:[#allocation11 + $0xf0] sm:$0xff]
      %v931 = vld [vmem:[#allocation11 + $0xf8] sm:$0xff]
      %v932 = vld [vmem:[#allocation11 + $0x100] sm:$0xff]
      %v933 = vld [vmem:[#allocation11 + $0x108] sm:$0xff]
      %v934 = vld [vmem:[#allocation11 + $0x110] sm:$0xff]
      %v935 = vld [vmem:[#allocation11 + $0x118] sm:$0xff]
      %v936 = vld [vmem:[#allocation11 + $0x120] sm:$0xff]
      %v937 = vld [vmem:[#allocation11 + $0x128] sm:$0xff]
      %v938 = vld [vmem:[#allocation11 + $0x130] sm:$0xff]
      %v939 = vld [vmem:[#allocation11 + $0x138] sm:$0xff]
      %v940 = vld [vmem:[#allocation11 + $0x140] sm:$0xff]
      %v941 = vld [vmem:[#allocation11 + $0x148] sm:$0xff]
      %v942 = vld [vmem:[#allocation11 + $0x150] sm:$0xff]
      %v943 = vld [vmem:[#allocation11 + $0x158] sm:$0xff]
      %v944 = vld [vmem:[#allocation11 + $0x160] sm:$0xff]
      %v945 = vld [vmem:[#allocation11 + $0x168] sm:$0xff]
      %v946 = vld [vmem:[#allocation11 + $0x170] sm:$0xff]
      %v947 = vld [vmem:[#allocation11 + $0x178] sm:$0xff]
      %v948 = vld [vmem:[#allocation11 + $0x180] sm:$0xff]
      %v949 = vld [vmem:[#allocation11 + $0x188] sm:$0xff]
      %v950 = vld [vmem:[#allocation11 + $0x190] sm:$0xff]
      %v951 = vld [vmem:[#allocation11 + $0x198] sm:$0xff]
      %v952 = vld [vmem:[#allocation11 + $0x1a0] sm:$0xff]
      %v953 = vld [vmem:[#allocation11 + $0x1a8] sm:$0xff]
      %v954 = vld [vmem:[#allocation11 + $0x1b0] sm:$0xff]
      %v955 = vld [vmem:[#allocation11 + $0x1b8] sm:$0xff]
      %v956 = vld [vmem:[#allocation11 + $0x1c0] sm:$0xff]
      %v957 = vld [vmem:[#allocation11 + $0x1c8] sm:$0xff]
      %v958 = vld [vmem:[#allocation11 + $0x1d0] sm:$0xff]
      %v959 = vld [vmem:[#allocation11 + $0x1d8] sm:$0xff]
      %v960 = vld [vmem:[#allocation11 + $0x1e0] sm:$0xff]
      %v961 = vld [vmem:[#allocation11 + $0x1e8] sm:$0xff]
      %v962 = vld [vmem:[#allocation11 + $0x1f0] sm:$0xff]
      %v963 = vld [vmem:[#allocation11 + $0x1f8] sm:$0xff]
      %v964 = vld [vmem:[#allocation11 + $0x200] sm:$0xff]
      %v965 = vld [vmem:[#allocation11 + $0x208] sm:$0xff]
      %v966 = vld [vmem:[#allocation11 + $0x210] sm:$0xff]
      %v967 = vld [vmem:[#allocation11 + $0x218] sm:$0xff]
      %v968 = vld [vmem:[#allocation11 + $0x220] sm:$0xff]
      %v969 = vld [vmem:[#allocation11 + $0x228] sm:$0xff]
      %v970 = vld [vmem:[#allocation11 + $0x230] sm:$0xff]
      %v971 = vld [vmem:[#allocation11 + $0x238] sm:$0xff]
      %v972 = vld [vmem:[#allocation11 + $0x240] sm:$0xff]
      %v973 = vld [vmem:[#allocation11 + $0x248] sm:$0xff]
      %v974 = vld [vmem:[#allocation11 + $0x250] sm:$0xff]
      %v975 = vld [vmem:[#allocation11 + $0x258] sm:$0xff]
      %v976 = vld [vmem:[#allocation11 + $0x260] sm:$0xff]
      %v977 = vld [vmem:[#allocation11 + $0x268] sm:$0xff]
      %v978 = vld [vmem:[#allocation11 + $0x270] sm:$0xff]
      %v979 = vld [vmem:[#allocation11 + $0x278] sm:$0xff]
      %v980 = vld [vmem:[#allocation11 + $0x280] sm:$0xff]
      %v981 = vld [vmem:[#allocation11 + $0x288] sm:$0xff]
      %v982 = vld [vmem:[#allocation11 + $0x290] sm:$0xff]
      %v983 = vld [vmem:[#allocation11 + $0x298] sm:$0xff]
      %v984 = vld [vmem:[#allocation11 + $0x2a0] sm:$0xff]
      %v985 = vld [vmem:[#allocation11 + $0x2a8] sm:$0xff]
      %v986 = vld [vmem:[#allocation11 + $0x2b0] sm:$0xff]
      %v987 = vld [vmem:[#allocation11 + $0x2b8] sm:$0xff]
      %v988 = vld [vmem:[#allocation11 + $0x2c0] sm:$0xff]
      %v989 = vld [vmem:[#allocation11 + $0x2c8] sm:$0xff]
      %v990 = vld [vmem:[#allocation11 + $0x2d0] sm:$0xff]
      %v991 = vld [vmem:[#allocation11 + $0x2d8] sm:$0xff]
      %v992 = vld [vmem:[#allocation11 + $0x2e0] sm:$0xff]
      %v993 = vld [vmem:[#allocation11 + $0x2e8] sm:$0xff]
      %v994 = vld [vmem:[#allocation11 + $0x2f0] sm:$0xff]
      %v995 = vld [vmem:[#allocation11 + $0x2f8] sm:$0xff]
      %v996 = vld [vmem:[%s5] sm:$0x3f]
      %v997 = vld [vmem:[%s1] sm:$0x3]
      %v998 = vld [vmem:[#allocation2] sm:$0x3f]
      %v1000 = vlaneseq
      %v1001 = vshrl.u32 %v1000, 7
      %v1002 = vsub.s32 0, %v1001
      %v1003 = vrot.slane %v997, %v1002
      %v1004 = vlaneseq
      %v1005 = vshrl.u32 %v1004, 7
      %v1006 = vsub.s32 1, %v1005
      %v1007 = vrot.slane %v997, %v1006
      %v1010 = vpack.c.bf16 %v1003, %v1003
      %v1011 = vpack.c.bf16 %v1007, %v1007
      %v1108 = vunpack.c.l.b16 %v900
      %v1109 = vunpack.c.h.b16 %v900
      %v1110 = vunpack.c.l.b16 %v901
      %v1111 = vunpack.c.h.b16 %v901
      %v1112 = vunpack.c.l.b16 %v902
      %v1113 = vunpack.c.h.b16 %v902
      %v1114 = vunpack.c.l.b16 %v903
      %v1115 = vunpack.c.h.b16 %v903
      %v1116 = vunpack.c.l.b16 %v904
      %v1117 = vunpack.c.h.b16 %v904
      %v1118 = vunpack.c.l.b16 %v905
      %v1119 = vunpack.c.h.b16 %v905
      %v1120 = vunpack.c.l.b16 %v906
      %v1121 = vunpack.c.h.b16 %v906
      %v1122 = vunpack.c.l.b16 %v907
      %v1123 = vunpack.c.h.b16 %v907
      %v1124 = vunpack.c.l.b16 %v908
      %v1125 = vunpack.c.h.b16 %v908
      %v1126 = vunpack.c.l.b16 %v909
      %v1127 = vunpack.c.h.b16 %v909
      %v1128 = vunpack.c.l.b16 %v910
      %v1129 = vunpack.c.h.b16 %v910
      %v1130 = vunpack.c.l.b16 %v911
      %v1131 = vunpack.c.h.b16 %v911
      %v1132 = vunpack.c.l.b16 %v912
      %v1133 = vunpack.c.h.b16 %v912
      %v1134 = vunpack.c.l.b16 %v913
      %v1135 = vunpack.c.h.b16 %v913
      %v1136 = vunpack.c.l.b16 %v914
      %v1137 = vunpack.c.h.b16 %v914
      %v1138 = vunpack.c.l.b16 %v915
      %v1139 = vunpack.c.h.b16 %v915
      %v1140 = vunpack.c.l.b16 %v916
      %v1141 = vunpack.c.h.b16 %v916
      %v1142 = vunpack.c.l.b16 %v917
      %v1143 = vunpack.c.h.b16 %v917
      %v1144 = vunpack.c.l.b16 %v918
      %v1145 = vunpack.c.h.b16 %v918
      %v1146 = vunpack.c.l.b16 %v919
      %v1147 = vunpack.c.h.b16 %v919
      %v1148 = vunpack.c.l.b16 %v920
      %v1149 = vunpack.c.h.b16 %v920
      %v1150 = vunpack.c.l.b16 %v921
      %v1151 = vunpack.c.h.b16 %v921
      %v1152 = vunpack.c.l.b16 %v922
      %v1153 = vunpack.c.h.b16 %v922
      %v1154 = vunpack.c.l.b16 %v923
      %v1155 = vunpack.c.h.b16 %v923
      %v1156 = vunpack.c.l.b16 %v924
      %v1157 = vunpack.c.h.b16 %v924
      %v1158 = vunpack.c.l.b16 %v925
      %v1159 = vunpack.c.h.b16 %v925
      %v1160 = vunpack.c.l.b16 %v926
      %v1161 = vunpack.c.h.b16 %v926
      %v1162 = vunpack.c.l.b16 %v927
      %v1163 = vunpack.c.h.b16 %v927
      %v1164 = vunpack.c.l.b16 %v928
      %v1165 = vunpack.c.h.b16 %v928
      %v1166 = vunpack.c.l.b16 %v929
      %v1167 = vunpack.c.h.b16 %v929
      %v1168 = vunpack.c.l.b16 %v930
      %v1169 = vunpack.c.h.b16 %v930
      %v1170 = vunpack.c.l.b16 %v931
      %v1171 = vunpack.c.h.b16 %v931
      %v1172 = vunpack.c.l.b16 %v932
      %v1173 = vunpack.c.h.b16 %v932
      %v1174 = vunpack.c.l.b16 %v933
      %v1175 = vunpack.c.h.b16 %v933
      %v1176 = vunpack.c.l.b16 %v934
      %v1177 = vunpack.c.h.b16 %v934
      %v1178 = vunpack.c.l.b16 %v935
      %v1179 = vunpack.c.h.b16 %v935
      %v1180 = vunpack.c.l.b16 %v936
      %v1181 = vunpack.c.h.b16 %v936
      %v1182 = vunpack.c.l.b16 %v937
      %v1183 = vunpack.c.h.b16 %v937
      %v1184 = vunpack.c.l.b16 %v938
      %v1185 = vunpack.c.h.b16 %v938
      %v1186 = vunpack.c.l.b16 %v939
      %v1187 = vunpack.c.h.b16 %v939
      %v1188 = vunpack.c.l.b16 %v940
      %v1189 = vunpack.c.h.b16 %v940
      %v1190 = vunpack.c.l.b16 %v941
      %v1191 = vunpack.c.h.b16 %v941
      %v1192 = vunpack.c.l.b16 %v942
      %v1193 = vunpack.c.h.b16 %v942
      %v1194 = vunpack.c.l.b16 %v943
      %v1195 = vunpack.c.h.b16 %v943
      %v1196 = vunpack.c.l.b16 %v944
      %v1197 = vunpack.c.h.b16 %v944
      %v1198 = vunpack.c.l.b16 %v945
      %v1199 = vunpack.c.h.b16 %v945
      %v1200 = vunpack.c.l.b16 %v946
      %v1201 = vunpack.c.h.b16 %v946
      %v1202 = vunpack.c.l.b16 %v947
      %v1203 = vunpack.c.h.b16 %v947
      %v1204 = vunpack.c.l.b16 %v948
      %v1205 = vunpack.c.h.b16 %v948
      %v1206 = vunpack.c.l.b16 %v949
      %v1207 = vunpack.c.h.b16 %v949
      %v1208 = vunpack.c.l.b16 %v950
      %v1209 = vunpack.c.h.b16 %v950
      %v1210 = vunpack.c.l.b16 %v951
      %v1211 = vunpack.c.h.b16 %v951
      %v1212 = vunpack.c.l.b16 %v952
      %v1213 = vunpack.c.h.b16 %v952
      %v1214 = vunpack.c.l.b16 %v953
      %v1215 = vunpack.c.h.b16 %v953
      %v1216 = vunpack.c.l.b16 %v954
      %v1217 = vunpack.c.h.b16 %v954
      %v1218 = vunpack.c.l.b16 %v955
      %v1219 = vunpack.c.h.b16 %v955
      %v1220 = vunpack.c.l.b16 %v956
      %v1221 = vunpack.c.h.b16 %v956
      %v1222 = vunpack.c.l.b16 %v957
      %v1223 = vunpack.c.h.b16 %v957
      %v1224 = vunpack.c.l.b16 %v958
      %v1225 = vunpack.c.h.b16 %v958
      %v1226 = vunpack.c.l.b16 %v959
      %v1227 = vunpack.c.h.b16 %v959
      %v1228 = vunpack.c.l.b16 %v960
      %v1229 = vunpack.c.h.b16 %v960
      %v1230 = vunpack.c.l.b16 %v961
      %v1231 = vunpack.c.h.b16 %v961
      %v1232 = vunpack.c.l.b16 %v962
      %v1233 = vunpack.c.h.b16 %v962
      %v1234 = vunpack.c.l.b16 %v963
      %v1235 = vunpack.c.h.b16 %v963
      %v1236 = vunpack.c.l.b16 %v964
      %v1237 = vunpack.c.h.b16 %v964
      %v1238 = vunpack.c.l.b16 %v965
      %v1239 = vunpack.c.h.b16 %v965
      %v1240 = vunpack.c.l.b16 %v966
      %v1241 = vunpack.c.h.b16 %v966
      %v1242 = vunpack.c.l.b16 %v967
      %v1243 = vunpack.c.h.b16 %v967
      %v1244 = vunpack.c.l.b16 %v968
      %v1245 = vunpack.c.h.b16 %v968
      %v1246 = vunpack.c.l.b16 %v969
      %v1247 = vunpack.c.h.b16 %v969
      %v1248 = vunpack.c.l.b16 %v970
      %v1249 = vunpack.c.h.b16 %v970
      %v1250 = vunpack.c.l.b16 %v971
      %v1251 = vunpack.c.h.b16 %v971
      %v1252 = vunpack.c.l.b16 %v972
      %v1253 = vunpack.c.h.b16 %v972
      %v1254 = vunpack.c.l.b16 %v973
      %v1255 = vunpack.c.h.b16 %v973
      %v1256 = vunpack.c.l.b16 %v974
      %v1257 = vunpack.c.h.b16 %v974
      %v1258 = vunpack.c.l.b16 %v975
      %v1259 = vunpack.c.h.b16 %v975
      %v1260 = vunpack.c.l.b16 %v976
      %v1261 = vunpack.c.h.b16 %v976
      %v1262 = vunpack.c.l.b16 %v977
      %v1263 = vunpack.c.h.b16 %v977
      %v1264 = vunpack.c.l.b16 %v978
      %v1265 = vunpack.c.h.b16 %v978
      %v1266 = vunpack.c.l.b16 %v979
      %v1267 = vunpack.c.h.b16 %v979
      %v1268 = vunpack.c.l.b16 %v980
      %v1269 = vunpack.c.h.b16 %v980
      %v1270 = vunpack.c.l.b16 %v981
      %v1271 = vunpack.c.h.b16 %v981
      %v1272 = vunpack.c.l.b16 %v982
      %v1273 = vunpack.c.h.b16 %v982
      %v1274 = vunpack.c.l.b16 %v983
      %v1275 = vunpack.c.h.b16 %v983
      %v1276 = vunpack.c.l.b16 %v984
      %v1277 = vunpack.c.h.b16 %v984
      %v1278 = vunpack.c.l.b16 %v985
      %v1279 = vunpack.c.h.b16 %v985
      %v1280 = vunpack.c.l.b16 %v986
      %v1281 = vunpack.c.h.b16 %v986
      %v1282 = vunpack.c.l.b16 %v987
      %v1283 = vunpack.c.h.b16 %v987
      %v1284 = vunpack.c.l.b16 %v988
      %v1285 = vunpack.c.h.b16 %v988
      %v1286 = vunpack.c.l.b16 %v989
      %v1287 = vunpack.c.h.b16 %v989
      %v1288 = vunpack.c.l.b16 %v990
      %v1289 = vunpack.c.h.b16 %v990
      %v1290 = vunpack.c.l.b16 %v991
      %v1291 = vunpack.c.h.b16 %v991
      %v1292 = vunpack.c.l.b16 %v992
      %v1293 = vunpack.c.h.b16 %v992
      %v1294 = vunpack.c.l.b16 %v993
      %v1295 = vunpack.c.h.b16 %v993
      %v1296 = vunpack.c.l.b16 %v994
      %v1297 = vunpack.c.h.b16 %v994
      %v1298 = vunpack.c.l.b16 %v995
      %v1299 = vunpack.c.h.b16 %v995
      %v1300 = vpack.c.b16 %v1114, %v1108
      %v1301 = vpack.c.b16 %v1115, %v1109
      %v1302 = vpack.c.b16 %v1116, %v1110
      %v1303 = vpack.c.b16 %v1117, %v1111
      %v1304 = vpack.c.b16 %v1118, %v1112
      %v1305 = vpack.c.b16 %v1119, %v1113
      %v1306 = vpack.c.b16 %v1126, %v1120
      %v1307 = vpack.c.b16 %v1127, %v1121
      %v1308 = vpack.c.b16 %v1128, %v1122
      %v1309 = vpack.c.b16 %v1129, %v1123
      %v1310 = vpack.c.b16 %v1130, %v1124
      %v1311 = vpack.c.b16 %v1131, %v1125
      %v1312 = vpack.c.b16 %v1138, %v1132
      %v1313 = vpack.c.b16 %v1139, %v1133
      %v1314 = vpack.c.b16 %v1140, %v1134
      %v1315 = vpack.c.b16 %v1141, %v1135
      %v1316 = vpack.c.b16 %v1142, %v1136
      %v1317 = vpack.c.b16 %v1143, %v1137
      %v1318 = vpack.c.b16 %v1150, %v1144
      %v1319 = vpack.c.b16 %v1151, %v1145
      %v1320 = vpack.c.b16 %v1152, %v1146
      %v1321 = vpack.c.b16 %v1153, %v1147
      %v1322 = vpack.c.b16 %v1154, %v1148
      %v1323 = vpack.c.b16 %v1155, %v1149
      %v1324 = vpack.c.b16 %v1162, %v1156
      %v1325 = vpack.c.b16 %v1163, %v1157
      %v1326 = vpack.c.b16 %v1164, %v1158
      %v1327 = vpack.c.b16 %v1165, %v1159
      %v1328 = vpack.c.b16 %v1166, %v1160
      %v1329 = vpack.c.b16 %v1167, %v1161
      %v1330 = vpack.c.b16 %v1174, %v1168
      %v1331 = vpack.c.b16 %v1175, %v1169
      %v1332 = vpack.c.b16 %v1176, %v1170
      %v1333 = vpack.c.b16 %v1177, %v1171
      %v1334 = vpack.c.b16 %v1178, %v1172
      %v1335 = vpack.c.b16 %v1179, %v1173
      %v1336 = vpack.c.b16 %v1186, %v1180
      %v1337 = vpack.c.b16 %v1187, %v1181
      %v1338 = vpack.c.b16 %v1188, %v1182
      %v1339 = vpack.c.b16 %v1189, %v1183
      %v1340 = vpack.c.b16 %v1190, %v1184
      %v1341 = vpack.c.b16 %v1191, %v1185
      %v1342 = vpack.c.b16 %v1198, %v1192
      %v1343 = vpack.c.b16 %v1199, %v1193
      %v1344 = vpack.c.b16 %v1200, %v1194
      %v1345 = vpack.c.b16 %v1201, %v1195
      %v1346 = vpack.c.b16 %v1202, %v1196
      %v1347 = vpack.c.b16 %v1203, %v1197
      %v1348 = vpack.c.b16 %v1210, %v1204
      %v1349 = vpack.c.b16 %v1211, %v1205
      %v1350 = vpack.c.b16 %v1212, %v1206
      %v1351 = vpack.c.b16 %v1213, %v1207
      %v1352 = vpack.c.b16 %v1214, %v1208
      %v1353 = vpack.c.b16 %v1215, %v1209
      %v1354 = vpack.c.b16 %v1222, %v1216
      %v1355 = vpack.c.b16 %v1223, %v1217
      %v1356 = vpack.c.b16 %v1224, %v1218
      %v1357 = vpack.c.b16 %v1225, %v1219
      %v1358 = vpack.c.b16 %v1226, %v1220
      %v1359 = vpack.c.b16 %v1227, %v1221
      %v1360 = vpack.c.b16 %v1234, %v1228
      %v1361 = vpack.c.b16 %v1235, %v1229
      %v1362 = vpack.c.b16 %v1236, %v1230
      %v1363 = vpack.c.b16 %v1237, %v1231
      %v1364 = vpack.c.b16 %v1238, %v1232
      %v1365 = vpack.c.b16 %v1239, %v1233
      %v1366 = vpack.c.b16 %v1246, %v1240
      %v1367 = vpack.c.b16 %v1247, %v1241
      %v1368 = vpack.c.b16 %v1248, %v1242
      %v1369 = vpack.c.b16 %v1249, %v1243
      %v1370 = vpack.c.b16 %v1250, %v1244
      %v1371 = vpack.c.b16 %v1251, %v1245
      %v1372 = vpack.c.b16 %v1258, %v1252
      %v1373 = vpack.c.b16 %v1259, %v1253
      %v1374 = vpack.c.b16 %v1260, %v1254
      %v1375 = vpack.c.b16 %v1261, %v1255
      %v1376 = vpack.c.b16 %v1262, %v1256
      %v1377 = vpack.c.b16 %v1263, %v1257
      %v1378 = vpack.c.b16 %v1270, %v1264
      %v1379 = vpack.c.b16 %v1271, %v1265
      %v1380 = vpack.c.b16 %v1272, %v1266
      %v1381 = vpack.c.b16 %v1273, %v1267
      %v1382 = vpack.c.b16 %v1274, %v1268
      %v1383 = vpack.c.b16 %v1275, %v1269
      %v1384 = vpack.c.b16 %v1282, %v1276
      %v1385 = vpack.c.b16 %v1283, %v1277
      %v1386 = vpack.c.b16 %v1284, %v1278
      %v1387 = vpack.c.b16 %v1285, %v1279
      %v1388 = vpack.c.b16 %v1286, %v1280
      %v1389 = vpack.c.b16 %v1287, %v1281
      %v1390 = vpack.c.b16 %v1294, %v1288
      %v1391 = vpack.c.b16 %v1295, %v1289
      %v1392 = vpack.c.b16 %v1296, %v1290
      %v1393 = vpack.c.b16 %v1297, %v1291
      %v1394 = vpack.c.b16 %v1298, %v1292
      %v1395 = vpack.c.b16 %v1299, %v1293
      %v1493 = vlaneseq
      %v1494 = vshrl.u32 %v1493, 7
      %v1495 = vsub.s32 0, %v1494
      %v1496 = vrot.slane %v996, %v1495
      %v1497 = vlaneseq
      %v1498 = vshrl.u32 %v1497, 7
      %v1499 = vsub.s32 1, %v1498
      %v1500 = vrot.slane %v996, %v1499
      %v1501 = vlaneseq
      %v1502 = vshrl.u32 %v1501, 7
      %v1503 = vsub.s32 2, %v1502
      %v1504 = vrot.slane %v996, %v1503
      %v1505 = vlaneseq
      %v1506 = vshrl.u32 %v1505, 7
      %v1507 = vsub.s32 3, %v1506
      %v1508 = vrot.slane %v996, %v1507
      %v1509 = vlaneseq
      %v1510 = vshrl.u32 %v1509, 7
      %v1511 = vsub.s32 4, %v1510
      %v1512 = vrot.slane %v996, %v1511
      %v1513 = vlaneseq
      %v1514 = vshrl.u32 %v1513, 7
      %v1515 = vsub.s32 5, %v1514
      %v1516 = vrot.slane %v996, %v1515
      %1523 = vmatprep.subr.bf16.mxu0 %v1301
      %1524 = vmatpush1.bf16.msra.mxu0 %v1300
      %1525 = vmatprep.subr.bf16.mxu0 %v1307
      %1526 = vmatpush1.bf16.msra.mxu0 %v1306
      %1527 = vmatprep.subr.bf16.mxu0 %v1313
      %1528 = vmatpush1.bf16.msra.mxu0 %v1312
      %1529 = vmatprep.subr.bf16.mxu0 %v1319
      %1530 = vmatpush1.bf16.msra.mxu0 %v1318
      %1531 = vmatprep.subr.bf16.mxu0 %v1325
      %1532 = vmatpush1.bf16.msra.mxu0 %v1324
      %1533 = vmatprep.subr.bf16.mxu0 %v1331
      %1534 = vmatpush1.bf16.msra.mxu0 %v1330
      %1535 = vmatprep.subr.bf16.mxu0 %v1337
      %1536 = vmatpush1.bf16.msra.mxu0 %v1336
      %1537 = vmatprep.subr.bf16.mxu0 %v1343
      %1538 = vmatpush1.bf16.msra.mxu0 %v1342
      %1539 = vmatprep.subr.bf16.mxu0 %v1349
      %1540 = vmatpush1.bf16.msra.mxu0 %v1348
      %1541 = vmatprep.subr.bf16.mxu0 %v1355
      %1542 = vmatpush1.bf16.msra.mxu0 %v1354
      %1543 = vmatprep.subr.bf16.mxu0 %v1361
      %1544 = vmatpush1.bf16.msra.mxu0 %v1360
      %1545 = vmatprep.subr.bf16.mxu0 %v1367
      %1546 = vmatpush1.bf16.msra.mxu0 %v1366
      %1547 = vmatprep.subr.bf16.mxu0 %v1373
      %1548 = vmatpush1.bf16.msra.mxu0 %v1372
      %1549 = vmatprep.subr.bf16.mxu0 %v1379
      %1550 = vmatpush1.bf16.msra.mxu0 %v1378
      %1551 = vmatprep.subr.bf16.mxu0 %v1385
      %1552 = vmatpush1.bf16.msra.mxu0 %v1384
      %1553 = vmatprep.subr.bf16.mxu0 %v1391
      %1554 = vmatpush1.bf16.msra.mxu0 %v1390
      %1555 = vmatprep.mubr.bf16.mxu0 %v1011
      %1556 = vmatmul.mubr.bf16.gmra.mrb[0].mxu0 %v1010
      %v1557 = vpop.f32.mrb[0].mxu0
      %v1558 = vadd.f32 %v1496, %v1557
      %v1559 = vpop.f32.mrb[0].mxu0
      %v1560 = vadd.f32 %v1500, %v1559
      %v1561 = vpop.f32.mrb[0].mxu0
      %v1562 = vpop.f32.mrb[0].mxu0
      %1563 = vdwg.mxu0
      %1564 = vmatprep.subr.bf16.mxu0 %v1303
      %1565 = vmatpush1.bf16.msra.mxu0 %v1302
      %1566 = vmatprep.subr.bf16.mxu0 %v1309
      %1567 = vmatpush1.bf16.msra.mxu0 %v1308
      %1568 = vmatprep.subr.bf16.mxu0 %v1315
      %1569 = vmatpush1.bf16.msra.mxu0 %v1314
      %1570 = vmatprep.subr.bf16.mxu0 %v1321
      %1571 = vmatpush1.bf16.msra.mxu0 %v1320
      %1572 = vmatprep.subr.bf16.mxu0 %v1327
      %1573 = vmatpush1.bf16.msra.mxu0 %v1326
      %1574 = vmatprep.subr.bf16.mxu0 %v1333
      %1575 = vmatpush1.bf16.msra.mxu0 %v1332
      %1576 = vmatprep.subr.bf16.mxu0 %v1339
      %1577 = vmatpush1.bf16.msra.mxu0 %v1338
      %1578 = vmatprep.subr.bf16.mxu0 %v1345
      %1579 = vmatpush1.bf16.msra.mxu0 %v1344
      %1580 = vmatprep.subr.bf16.mxu0 %v1351
      %1581 = vmatpush1.bf16.msra.mxu0 %v1350
      %1582 = vmatprep.subr.bf16.mxu0 %v1357
      %1583 = vmatpush1.bf16.msra.mxu0 %v1356
      %1584 = vmatprep.subr.bf16.mxu0 %v1363
      %1585 = vmatpush1.bf16.msra.mxu0 %v1362
      %1586 = vmatprep.subr.bf16.mxu0 %v1369
      %1587 = vmatpush1.bf16.msra.mxu0 %v1368
      %1588 = vmatprep.subr.bf16.mxu0 %v1375
      %1589 = vmatpush1.bf16.msra.mxu0 %v1374
      %1590 = vmatprep.subr.bf16.mxu0 %v1381
      %1591 = vmatpush1.bf16.msra.mxu0 %v1380
      %1592 = vmatprep.subr.bf16.mxu0 %v1387
      %1593 = vmatpush1.bf16.msra.mxu0 %v1386
      %1594 = vmatprep.subr.bf16.mxu0 %v1393
      %1595 = vmatpush1.bf16.msra.mxu0 %v1392
      %1596 = vmatprep.mubr.bf16.mxu0 %v1011
      %1597 = vmatmul.mubr.bf16.gmra.mrb[0].mxu0 %v1010
      %v1598 = vpop.f32.mrb[0].mxu0
      %v1599 = vadd.f32 %v1504, %v1598
      %v1600 = vpop.f32.mrb[0].mxu0
      %v1601 = vadd.f32 %v1508, %v1600
      %v1602 = vpop.f32.mrb[0].mxu0
      %v1603 = vpop.f32.mrb[0].mxu0
      %1604 = vdwg.mxu0
      %1605 = vmatprep.subr.bf16.mxu0 %v1305
      %1606 = vmatpush1.bf16.msra.mxu0 %v1304
      %1607 = vmatprep.subr.bf16.mxu0 %v1311
      %1608 = vmatpush1.bf16.msra.mxu0 %v1310
      %1609 = vmatprep.subr.bf16.mxu0 %v1317
      %1610 = vmatpush1.bf16.msra.mxu0 %v1316
      %1611 = vmatprep.subr.bf16.mxu0 %v1323
      %1612 = vmatpush1.bf16.msra.mxu0 %v1322
      %1613 = vmatprep.subr.bf16.mxu0 %v1329
      %1614 = vmatpush1.bf16.msra.mxu0 %v1328
      %1615 = vmatprep.subr.bf16.mxu0 %v1335
      %1616 = vmatpush1.bf16.msra.mxu0 %v1334
      %1617 = vmatprep.subr.bf16.mxu0 %v1341
      %1618 = vmatpush1.bf16.msra.mxu0 %v1340
      %1619 = vmatprep.subr.bf16.mxu0 %v1347
      %1620 = vmatpush1.bf16.msra.mxu0 %v1346
      %1621 = vmatprep.subr.bf16.mxu0 %v1353
      %1622 = vmatpush1.bf16.msra.mxu0 %v1352
      %1623 = vmatprep.subr.bf16.mxu0 %v1359
      %1624 = vmatpush1.bf16.msra.mxu0 %v1358
      %1625 = vmatprep.subr.bf16.mxu0 %v1365
      %1626 = vmatpush1.bf16.msra.mxu0 %v1364
      %1627 = vmatprep.subr.bf16.mxu0 %v1371
      %1628 = vmatpush1.bf16.msra.mxu0 %v1370
      %1629 = vmatprep.subr.bf16.mxu0 %v1377
      %1630 = vmatpush1.bf16.msra.mxu0 %v1376
      %1631 = vmatprep.subr.bf16.mxu0 %v1383
      %1632 = vmatpush1.bf16.msra.mxu0 %v1382
      %1633 = vmatprep.subr.bf16.mxu0 %v1389
      %1634 = vmatpush1.bf16.msra.mxu0 %v1388
      %1635 = vmatprep.subr.bf16.mxu0 %v1395
      %1636 = vmatpush1.bf16.msra.mxu0 %v1394
      %1637 = vmatprep.mubr.bf16.mxu0 %v1011
      %1638 = vmatmul.mubr.bf16.gmra.mrb[0].mxu0 %v1010
      %v1639 = vpop.f32.mrb[0].mxu0
      %v1640 = vadd.f32 %v1512, %v1639
      %v1641 = vpop.f32.mrb[0].mxu0
      %v1642 = vadd.f32 %v1516, %v1641
      %v1643 = vpop.f32.mrb[0].mxu0
      %v1644 = vpop.f32.mrb[0].mxu0
      %1645 = vdwg.mxu0
      %v1648 = vcombine.low %v1558, %v1560
      %v1650 = vunpack.c.l.s4 1966171168
      %v1651 = vunpack.c.0.s8 %v1650
      %v1652 = vlaneseq
      %v1653 = vshrl.u32 %v1652, 7
      %v1654 = vsub.s32 %v1651, %v1653
      %v1655 = vrot.slane %v1648, %v1654
      %v1657 = vunpack.c.l.s4 1966171168
      %v1658 = vunpack.c.0.s8 %v1657
      %v1659 = vlaneseq
      %v1660 = vshrl.u32 %v1659, 7
      %v1661 = vsub.s32 %v1658, %v1660
      %v1662 = vrot.slane %v1655, %v1661
      %v1664 = vadd.f32 %v998, %v1662
      %v1665 = vxor.u32 %v1664, 2147483648
      %v1666 = vmul.f32 %v1665, 1.442695
      %v1667 = vpow.pop %v1666
      %v1668 = vadd.f32 %v1667, 1.0
      %v1669 = vrcp.pop %v1668
      %v1670 = vmul.f32 1.0, %v1669
      %v1672 = vrot.slane %v998, 2
      %v1676 = vcombine.low %v1599, %v1601
      %v1678 = vunpack.c.l.s4 1966171168
      %v1679 = vunpack.c.0.s8 %v1678
      %v1680 = vlaneseq
      %v1681 = vshrl.u32 %v1680, 7
      %v1682 = vsub.s32 %v1679, %v1681
      %v1683 = vrot.slane %v1676, %v1682
      %v1685 = vunpack.c.l.s4 1966171168
      %v1686 = vunpack.c.0.s8 %v1685
      %v1687 = vlaneseq
      %v1688 = vshrl.u32 %v1687, 7
      %v1689 = vsub.s32 %v1686, %v1688
      %v1690 = vrot.slane %v1683, %v1689
      %v1692 = vadd.f32 %v1672, %v1690
      %v1693 = vxor.u32 %v1692, 2147483648
      %v1694 = vmul.f32 %v1693, 1.442695
      %v1695 = vpow.pop %v1694
      %v1696 = vadd.f32 %v1695, 1.0
      %v1697 = vrcp.pop %v1696
      %v1698 = vmul.f32 1.0, %v1697
      %v1701 = vcombine.low %v1640, %v1642
      %v1703 = vunpack.c.l.s4 1966171168
      %v1704 = vunpack.c.0.s8 %v1703
      %v1705 = vlaneseq
      %v1706 = vshrl.u32 %v1705, 7
      %v1707 = vsub.s32 %v1704, %v1706
      %v1708 = vrot.slane %v1701, %v1707
      %v1710 = vunpack.c.l.s4 1966171168
      %v1711 = vunpack.c.0.s8 %v1710
      %v1712 = vlaneseq
      %v1713 = vshrl.u32 %v1712, 7
      %v1714 = vsub.s32 %v1711, %v1713
      %v1715 = vrot.slane %v1708, %v1714
      %v1717 = vmul.f32 %v1670, %v1715
      %v1718 = vrot.slane %v998, 4
      %v1720 = vadd.f32 %v1718, %v1717
      %v1721 = vtanh.pop %v1720
      %v1722 = vsub.f32 1.0, %v1698
      %v1723 = vmul.f32 %v1722, %v1721
      %v1724 = vmul.f32 %v1698, %v997
      %v1725 = vadd.f32 %v1723, %v1724
      %vm1726 = vcmp.lt.s32.totalorder %v895, 256
      %vm1727 = vmand %vm896, %vm1726
      %1728 = vst.msk [vmem:[#allocation3] sm:$0x3] %vm1727, %v1725
      %1729 = vst.msk [vmem:[#allocation17] sm:$0x3] %vm1727, %v1725
      %vm1730 = vcmask 0
      %1731 = vst.msk [vmem:[#allocation4] sm:$0x1] %vm1730, -inf
      %1732 = vst.msk [vmem:[#allocation5] sm:$0x1] %vm1730, 0.0
    $region53: #{tpu_custom_call.1} parent=1 // pred_fallthru
      _
    %v1733 = vld [vmem:[#allocation3] sm:$0x3]
    %v1735 = vlaneseq
    %v1736 = vshrl.u32 %v1735, 7
    %v1737 = vsub.s32 0, %v1736
    %v1738 = vrot.slane %v1733, %v1737
    %v1739 = vlaneseq
    %v1740 = vshrl.u32 %v1739, 7
    %v1741 = vsub.s32 1, %v1740
    %v1742 = vrot.slane %v1733, %v1741
    %v1745 = vpack.c.bf16 %v1738, %v1738
    %v1746 = vpack.c.bf16 %v1742, %v1742
    %v1747 = vld [vmem:[#allocation12] sm:$0xff]
    %v1748 = vld [vmem:[#allocation12 + $0x8] sm:$0xff]
    %v1749 = vld [vmem:[#allocation12 + $0x10] sm:$0xff]
    %v1750 = vld [vmem:[#allocation12 + $0x18] sm:$0xff]
    %v1751 = vld [vmem:[#allocation12 + $0x20] sm:$0xff]
    %v1752 = vld [vmem:[#allocation12 + $0x28] sm:$0xff]
    %v1753 = vld [vmem:[#allocation12 + $0x30] sm:$0xff]
    %v1754 = vld [vmem:[#allocation12 + $0x38] sm:$0xff]
    %v1755 = vld [vmem:[#allocation12 + $0x40] sm:$0xff]
    %v1756 = vld [vmem:[#allocation12 + $0x48] sm:$0xff]
    %v1757 = vld [vmem:[#allocation12 + $0x50] sm:$0xff]
    %v1758 = vld [vmem:[#allocation12 + $0x58] sm:$0xff]
    %v1759 = vld [vmem:[#allocation12 + $0x60] sm:$0xff]
    %v1760 = vld [vmem:[#allocation12 + $0x68] sm:$0xff]
    %v1761 = vld [vmem:[#allocation12 + $0x70] sm:$0xff]
    %v1762 = vld [vmem:[#allocation12 + $0x78] sm:$0xff]
    %v1763 = vld [vmem:[#allocation12 + $0x80] sm:$0xff]
    %v1764 = vld [vmem:[#allocation12 + $0x88] sm:$0xff]
    %v1765 = vld [vmem:[#allocation12 + $0x90] sm:$0xff]
    %v1766 = vld [vmem:[#allocation12 + $0x98] sm:$0xff]
    %v1767 = vld [vmem:[#allocation12 + $0xa0] sm:$0xff]
    %v1768 = vld [vmem:[#allocation12 + $0xa8] sm:$0xff]
    %v1769 = vld [vmem:[#allocation12 + $0xb0] sm:$0xff]
    %v1770 = vld [vmem:[#allocation12 + $0xb8] sm:$0xff]
    %v1771 = vld [vmem:[#allocation12 + $0xc0] sm:$0xff]
    %v1772 = vld [vmem:[#allocation12 + $0xc8] sm:$0xff]
    %v1773 = vld [vmem:[#allocation12 + $0xd0] sm:$0xff]
    %v1774 = vld [vmem:[#allocation12 + $0xd8] sm:$0xff]
    %v1775 = vld [vmem:[#allocation12 + $0xe0] sm:$0xff]
    %v1776 = vld [vmem:[#allocation12 + $0xe8] sm:$0xff]
    %v1777 = vld [vmem:[#allocation12 + $0xf0] sm:$0xff]
    %v1778 = vld [vmem:[#allocation12 + $0xf8] sm:$0xff]
    %v1779 = vld [vmem:[%s7] sm:$0x3]
    %v1812 = vunpack.c.l.b16 %v1747
    %v1813 = vunpack.c.h.b16 %v1747
    %v1814 = vunpack.c.l.b16 %v1748
    %v1815 = vunpack.c.h.b16 %v1748
    %v1816 = vunpack.c.l.b16 %v1749
    %v1817 = vunpack.c.h.b16 %v1749
    %v1818 = vunpack.c.l.b16 %v1750
    %v1819 = vunpack.c.h.b16 %v1750
    %v1820 = vunpack.c.l.b16 %v1751
    %v1821 = vunpack.c.h.b16 %v1751
    %v1822 = vunpack.c.l.b16 %v1752
    %v1823 = vunpack.c.h.b16 %v1752
    %v1824 = vunpack.c.l.b16 %v1753
    %v1825 = vunpack.c.h.b16 %v1753
    %v1826 = vunpack.c.l.b16 %v1754
    %v1827 = vunpack.c.h.b16 %v1754
    %v1828 = vunpack.c.l.b16 %v1755
    %v1829 = vunpack.c.h.b16 %v1755
    %v1830 = vunpack.c.l.b16 %v1756
    %v1831 = vunpack.c.h.b16 %v1756
    %v1832 = vunpack.c.l.b16 %v1757
    %v1833 = vunpack.c.h.b16 %v1757
    %v1834 = vunpack.c.l.b16 %v1758
    %v1835 = vunpack.c.h.b16 %v1758
    %v1836 = vunpack.c.l.b16 %v1759
    %v1837 = vunpack.c.h.b16 %v1759
    %v1838 = vunpack.c.l.b16 %v1760
    %v1839 = vunpack.c.h.b16 %v1760
    %v1840 = vunpack.c.l.b16 %v1761
    %v1841 = vunpack.c.h.b16 %v1761
    %v1842 = vunpack.c.l.b16 %v1762
    %v1843 = vunpack.c.h.b16 %v1762
    %v1844 = vunpack.c.l.b16 %v1763
    %v1845 = vunpack.c.h.b16 %v1763
    %v1846 = vunpack.c.l.b16 %v1764
    %v1847 = vunpack.c.h.b16 %v1764
    %v1848 = vunpack.c.l.b16 %v1765
    %v1849 = vunpack.c.h.b16 %v1765
    %v1850 = vunpack.c.l.b16 %v1766
    %v1851 = vunpack.c.h.b16 %v1766
    %v1852 = vunpack.c.l.b16 %v1767
    %v1853 = vunpack.c.h.b16 %v1767
    %v1854 = vunpack.c.l.b16 %v1768
    %v1855 = vunpack.c.h.b16 %v1768
    %v1856 = vunpack.c.l.b16 %v1769
    %v1857 = vunpack.c.h.b16 %v1769
    %v1858 = vunpack.c.l.b16 %v1770
    %v1859 = vunpack.c.h.b16 %v1770
    %v1860 = vunpack.c.l.b16 %v1771
    %v1861 = vunpack.c.h.b16 %v1771
    %v1862 = vunpack.c.l.b16 %v1772
    %v1863 = vunpack.c.h.b16 %v1772
    %v1864 = vunpack.c.l.b16 %v1773
    %v1865 = vunpack.c.h.b16 %v1773
    %v1866 = vunpack.c.l.b16 %v1774
    %v1867 = vunpack.c.h.b16 %v1774
    %v1868 = vunpack.c.l.b16 %v1775
    %v1869 = vunpack.c.h.b16 %v1775
    %v1870 = vunpack.c.l.b16 %v1776
    %v1871 = vunpack.c.h.b16 %v1776
    %v1872 = vunpack.c.l.b16 %v1777
    %v1873 = vunpack.c.h.b16 %v1777
    %v1874 = vunpack.c.l.b16 %v1778
    %v1875 = vunpack.c.h.b16 %v1778
    %v1876 = vpack.c.b16 %v1814, %v1812
    %v1877 = vpack.c.b16 %v1815, %v1813
    %v1878 = vpack.c.b16 %v1818, %v1816
    %v1879 = vpack.c.b16 %v1819, %v1817
    %v1880 = vpack.c.b16 %v1822, %v1820
    %v1881 = vpack.c.b16 %v1823, %v1821
    %v1882 = vpack.c.b16 %v1826, %v1824
    %v1883 = vpack.c.b16 %v1827, %v1825
    %v1884 = vpack.c.b16 %v1830, %v1828
    %v1885 = vpack.c.b16 %v1831, %v1829
    %v1886 = vpack.c.b16 %v1834, %v1832
    %v1887 = vpack.c.b16 %v1835, %v1833
    %v1888 = vpack.c.b16 %v1838, %v1836
    %v1889 = vpack.c.b16 %v1839, %v1837
    %v1890 = vpack.c.b16 %v1842, %v1840
    %v1891 = vpack.c.b16 %v1843, %v1841
    %v1892 = vpack.c.b16 %v1846, %v1844
    %v1893 = vpack.c.b16 %v1847, %v1845
    %v1894 = vpack.c.b16 %v1850, %v1848
    %v1895 = vpack.c.b16 %v1851, %v1849
    %v1896 = vpack.c.b16 %v1854, %v1852
    %v1897 = vpack.c.b16 %v1855, %v1853
    %v1898 = vpack.c.b16 %v1858, %v1856
    %v1899 = vpack.c.b16 %v1859, %v1857
    %v1900 = vpack.c.b16 %v1862, %v1860
    %v1901 = vpack.c.b16 %v1863, %v1861
    %v1902 = vpack.c.b16 %v1866, %v1864
    %v1903 = vpack.c.b16 %v1867, %v1865
    %v1904 = vpack.c.b16 %v1870, %v1868
    %v1905 = vpack.c.b16 %v1871, %v1869
    %v1906 = vpack.c.b16 %v1874, %v1872
    %v1907 = vpack.c.b16 %v1875, %v1873
    %v1941 = vlaneseq
    %v1942 = vshrl.u32 %v1941, 7
    %v1943 = vsub.s32 0, %v1942
    %v1944 = vrot.slane %v1779, %v1943
    %v1945 = vlaneseq
    %v1946 = vshrl.u32 %v1945, 7
    %v1947 = vsub.s32 1, %v1946
    %v1948 = vrot.slane %v1779, %v1947
    %1951 = vmatprep.subr.bf16.mxu0 %v1877
    %1952 = vmatpush1.bf16.msra.mxu0 %v1876
    %1953 = vmatprep.subr.bf16.mxu0 %v1879
    %1954 = vmatpush1.bf16.msra.mxu0 %v1878
    %1955 = vmatprep.subr.bf16.mxu0 %v1881
    %1956 = vmatpush1.bf16.msra.mxu0 %v1880
    %1957 = vmatprep.subr.bf16.mxu0 %v1883
    %1958 = vmatpush1.bf16.msra.mxu0 %v1882
    %1959 = vmatprep.subr.bf16.mxu0 %v1885
    %1960 = vmatpush1.bf16.msra.mxu0 %v1884
    %1961 = vmatprep.subr.bf16.mxu0 %v1887
    %1962 = vmatpush1.bf16.msra.mxu0 %v1886
    %1963 = vmatprep.subr.bf16.mxu0 %v1889
    %1964 = vmatpush1.bf16.msra.mxu0 %v1888
    %1965 = vmatprep.subr.bf16.mxu0 %v1891
    %1966 = vmatpush1.bf16.msra.mxu0 %v1890
    %1967 = vmatprep.subr.bf16.mxu0 %v1893
    %1968 = vmatpush1.bf16.msra.mxu0 %v1892
    %1969 = vmatprep.subr.bf16.mxu0 %v1895
    %1970 = vmatpush1.bf16.msra.mxu0 %v1894
    %1971 = vmatprep.subr.bf16.mxu0 %v1897
    %1972 = vmatpush1.bf16.msra.mxu0 %v1896
    %1973 = vmatprep.subr.bf16.mxu0 %v1899
    %1974 = vmatpush1.bf16.msra.mxu0 %v1898
    %1975 = vmatprep.subr.bf16.mxu0 %v1901
    %1976 = vmatpush1.bf16.msra.mxu0 %v1900
    %1977 = vmatprep.subr.bf16.mxu0 %v1903
    %1978 = vmatpush1.bf16.msra.mxu0 %v1902
    %1979 = vmatprep.subr.bf16.mxu0 %v1905
    %1980 = vmatpush1.bf16.msra.mxu0 %v1904
    %1981 = vmatprep.subr.bf16.mxu0 %v1907
    %1982 = vmatpush1.bf16.msra.mxu0 %v1906
    %1983 = vmatprep.mubr.bf16.mxu0 %v1746
    %1984 = vmatmul.mubr.bf16.gmra.mrb[0].mxu0 %v1745
    %v1985 = vpop.f32.mrb[0].mxu0
    %v1986 = vadd.f32 %v1944, %v1985
    %v1987 = vpop.f32.mrb[0].mxu0
    %v1988 = vadd.f32 %v1948, %v1987
    %v1989 = vpop.f32.mrb[0].mxu0
    %v1990 = vpop.f32.mrb[0].mxu0
    %1991 = vdwg.mxu0
    %v1994 = vcombine.low %v1986, %v1988
    %v1996 = vunpack.c.l.s4 1966171168
    %v1997 = vunpack.c.0.s8 %v1996
    %v1998 = vlaneseq
    %v1999 = vshrl.u32 %v1998, 7
    %v2000 = vsub.s32 %v1997, %v1999
    %v2001 = vrot.slane %v1994, %v2000
    %v2003 = vunpack.c.l.s4 1966171168
    %v2004 = vunpack.c.0.s8 %v2003
    %v2005 = vlaneseq
    %v2006 = vshrl.u32 %v2005, 7
    %v2007 = vsub.s32 %v2004, %v2006
    %v2008 = vrot.slane %v2001, %v2007
    %v2010 = vlaneseq
    %vm2011 = vcmp.ge.s32.totalorder %v2010, 0
    %vm2012 = vcmp.lt.s32.totalorder %v2010, 256
    %vm2013 = vmand %vm2011, %vm2012
    %2014 = vst.msk [vmem:[#allocation14] sm:$0x3] %vm2013, %v2008
    %v2015 = vld [vmem:[#allocation4] sm:$0x1]
    %vm2016 = vcmask 1040384
    %v2017 = vsel %vm2016, %v1986, -inf
    %v2018 = vsel %vm2016, %v1988, -inf
    %v2019 = vmax.f32 %v2017, %v2018
    %2020 = vmax.xlane.f32.xlu0 %v2019
    %v2021 = vpop.xlane.xlu0 %2020
    %v2022 = vmax.f32 %v2015, %v2021
    %v2023 = vld [vmem:[#allocation5] sm:$0x1]
    %v2024 = vsub.f32 %v2015, %v2022
    %v2025 = vmul.f32 %v2024, 1.442695
    %v2026 = vpow.pop %v2025
    %v2027 = vmul.f32 %v2023, %v2026
    %2029 = vset.pattern.permute.xlu0 0
    %2030 = vperm.xlu0 %2029, %v2022
    %v2031 = vpop.permute.xlu0 %2030
    %v2033 = vlaneseq
    %v2034 = vshrl.u32 %v2033, 7
    %v2035 = vsub.s32 0, %v2034
    %v2036 = vrot.slane %v2031, %v2035
    %v2037 = vsub.f32 %v1986, %v2036
    %v2038 = vsub.f32 %v1988, %v2036
    %v2039 = vmul.f32 %v2037, 1.442695
    %v2040 = vpow.pop %v2039
    %v2041 = vmul.f32 %v2038, 1.442695
    %v2042 = vpow.pop %v2041
    %v2043 = vsel %vm2016, %v2040, 0.0
    %v2044 = vsel %vm2016, %v2042, 0.0
    %v2045 = vadd.f32 %v2043, %v2044
    %2046 = vadd.xlane.f32.xlu0 %v2045
    %v2047 = vpop.xlane.xlu0 %2046
    %v2048 = vadd.f32 %v2027, %v2047
    %vm2049 = vcmask 0
    %2050 = vst.msk [vmem:[#allocation5] sm:$0x1] %vm2049, %v2048
    %2051 = vst.msk [vmem:[#allocation4] sm:$0x1] %vm2049, %v2022
    // Predicated region
    $region54: #{tpu_custom_call.1} parent=1 // pred_check
      %p2052 = pneg %p87
    $region55: #{tpu_custom_call.1} parent=1 // pred_check_branch
      %2054 = sbr.rel (%p2052) target = $region57
    $region56: #{tpu_custom_call.1} parent=1 // pred_region
      %v2055 = vld [vmem:[#allocation4] sm:$0x1]
      %v2056 = vld [vmem:[#allocation5] sm:$0x1]
      %v2057 = vlog2.pop %v2056
      %v2058 = vmul.f32 %v2057, 0.6931472
      %v2059 = vadd.f32 %v2055, %v2058
      %2060 = vst.msk [vmem:[#allocation15] sm:$0x1] %vm2049, %v2059
    $region57: #{tpu_custom_call.1} parent=1 // pred_fallthru
      _
    // Predicated region
    $region58: #{tpu_custom_call.1} parent=1 // pred_check
      _
    $region59: #{tpu_custom_call.1} parent=1 // pred_check_branch
      %2062 = sbr.rel (0) target = $region61
    $region60: #{tpu_custom_call.1} parent=1 // pred_region
      %s2064 = ssub.s32 32, 32
      %2065 = vsyncadd [#allocation8], %s2064
      %s2067 = sshll.u32 [#allocation14], 4
      %s2068 = int_to_ptr.vmem [resolvable:$true] %s2067
      %2070 = dma.vmem_to_hbm [thread:$0]  %s2068, 32, %s8, [#allocation8]
    $region61: #{tpu_custom_call.1} parent=1 // pred_fallthru
      _
    // Predicated region
    $region62: #{tpu_custom_call.1} parent=1 // pred_check
      _
    $region63: #{tpu_custom_call.1} parent=1 // pred_check_branch
      %2072 = sbr.rel (0) target = $region65
    $region64: #{tpu_custom_call.1} parent=1 // pred_region
      %s2074 = ssub.s32 16, 16
      %2075 = vsyncadd [#allocation16], %s2074
      %s2077 = sshll.u32 [#allocation15], 4
      %s2078 = int_to_ptr.vmem [resolvable:$true] %s2077
      %2080 = dma.vmem_to_hbm [thread:$0]  %s2078, 16, %s9, [#allocation16]
    $region65: #{tpu_custom_call.1} parent=1 // pred_fallthru
      _
    // Predicated region
    $region66: #{tpu_custom_call.1} parent=1 // pred_check
      _
    $region67: #{tpu_custom_call.1} parent=1 // pred_check_branch
      %2082 = sbr.rel (0) target = $region69
    $region68: #{tpu_custom_call.1} parent=1 // pred_region
      %s2084 = ssub.s32 32, 32
      %2085 = vsyncadd [#allocation16], %s2084
      %s2087 = sshll.u32 [#allocation17], 4
      %s2088 = int_to_ptr.vmem [resolvable:$true] %s2087
      %2090 = dma.vmem_to_hbm [thread:$0]  %s2088, 32, %s10, [#allocation16]
    $region69: #{tpu_custom_call.1} parent=1 // pred_fallthru
      _
    // Predicated region
    $region70: #{tpu_custom_call.1} parent=1 // pred_check
      _
    $region71: #{tpu_custom_call.1} parent=1 // pred_check_branch
      %2092 = sbr.rel (0) target = $region73
    $region72: #{tpu_custom_call.1} parent=1 // pred_region
      %2093 = dma.done [#allocation8], 32
    $region73: #{tpu_custom_call.1} parent=1 // pred_fallthru
      _
    // Predicated region
    $region74: #{tpu_custom_call.1} parent=1 // pred_check
      _
    $region75: #{tpu_custom_call.1} parent=1 // pred_check_branch
      %2095 = sbr.rel (0) target = $region77
    $region76: #{tpu_custom_call.1} parent=1 // pred_region
      %2096 = dma.done [#allocation16], 16
    $region77: #{tpu_custom_call.1} parent=1 // pred_fallthru
      _
    // Predicated region
    $region78: #{tpu_custom_call.1} parent=1 // pred_check
      _
    $region79: #{tpu_custom_call.1} parent=1 // pred_check_branch
      %2098 = sbr.rel (0) target = $region81
    $region80: #{tpu_custom_call.1} parent=1 // pred_region
      %2099 = dma.done [#allocation16], 32
    $region81: #{tpu_custom_call.1} parent=1 // pred_fallthru
      _
    %2100 = vsyncpa [#allocation7], 1
    %2101 = vsyncpa [#allocation10], 1
    %2102 = vsyncpa [#allocation13], 1
    %2103 = vsyncpa [#allocation8], 1
    %2104 = vsyncpa [#allocation16], 1

</llo_original>
